<compile_context>
chip_gen: v7x
topology: tpu7x:2x2x1
jax: 0.10.0
libtpu: 0.0.40
codegen_flags: <defaults>
</compile_context>

<pallas_src>
import functools

import jax
import jax.numpy as jnp
from jax.experimental import pallas as pl
from jax.experimental.pallas import tpu as pltpu

FEATURE_DIM = 320          # 'facebook/esm2_t6_8M_UR50D'
FEATURE_PAD = 384          # 3 * 128 lanes, zero-padded K for the first matmul
HIDDEN_DIM = 512
OUT_DIM = 256
LN_EPS = 1e-5


def _round_up(a, b):
    return (a + b - 1) // b * b


def _layernorm(h, gamma, beta):
    # h is f32; statistics stay in f32.
    mu = jnp.mean(h, axis=-1, keepdims=True)
    var = jnp.mean(jnp.square(h - mu), axis=-1, keepdims=True)
    return (h - mu) * jax.lax.rsqrt(var + LN_EPS) * gamma + beta


def layernorm_net_kernel(x_ref, w1_ref, w2_ref, w3_ref, vec_ref, o_ref):
    x = x_ref[...]                       # (bm, FEATURE_PAD) bf16
    b1 = vec_ref[0:1, :]                 # (1, HIDDEN_DIM)   f32
    g1 = vec_ref[1:2, :]
    be1 = vec_ref[2:3, :]
    b2 = vec_ref[3:4, :]
    g2 = vec_ref[4:5, :]
    be2 = vec_ref[5:6, :]
    b3 = vec_ref[6:7, :OUT_DIM]          # (1, OUT_DIM)

    # fc1 -> ln1 -> (dropout = identity) -> relu
    h = jnp.dot(x, w1_ref[...], preferred_element_type=jnp.float32) + b1
    h = _layernorm(h, g1, be1)
    h = jnp.maximum(h, 0.0).astype(jnp.bfloat16)

    # fc2 -> ln2 -> (dropout = identity) -> relu
    h = jnp.dot(h, w2_ref[...], preferred_element_type=jnp.float32) + b2
    h = _layernorm(h, g2, be2)
    h = jnp.maximum(h, 0.0).astype(jnp.bfloat16)

    # fc3
    y = jnp.dot(h, w3_ref[...], preferred_element_type=jnp.float32) + b3
    o_ref[...] = y.astype(o_ref.dtype)


def prepare_params(params):
    """One-time prep: pad/cast weights to bf16, pack small vectors into (8, 512)."""
    w1, b1, g1, be1, w2, b2, g2, be2, w3, b3 = params
    w1p = jnp.zeros((FEATURE_PAD, HIDDEN_DIM), jnp.float32).at[:FEATURE_DIM].set(w1)
    vecs = jnp.zeros((8, HIDDEN_DIM), jnp.float32)
    vecs = vecs.at[0].set(b1[0]).at[1].set(g1[0]).at[2].set(be1[0])
    vecs = vecs.at[3].set(b2[0]).at[4].set(g2[0]).at[5].set(be2[0])
    vecs = vecs.at[6, :OUT_DIM].set(b3[0])
    return (w1p.astype(jnp.bfloat16),
            w2.astype(jnp.bfloat16),
            w3.astype(jnp.bfloat16),
            vecs)


@functools.partial(jax.jit, static_argnames=("block_m",))
def layernorm_net(x, prepared, block_m=256):
    """x: (B, 320) f32.  prepared: output of prepare_params().  Returns (B, 256) f32."""
    w1, w2, w3, vecs = prepared
    B, F = x.shape
    assert F == FEATURE_DIM
    assert block_m % 8 == 0
    # Clamp the batch tile to the (8-aligned) batch so tiny batches stay cheap;
    # for large B the default 256 keeps the grid large enough for both cores.
    bm = min(block_m, _round_up(B, 8))
    B_pad = _round_up(B, bm)

    x_pad = jnp.zeros((B_pad, FEATURE_PAD), jnp.bfloat16)
    x_pad = x_pad.at[:B, :FEATURE_DIM].set(x.astype(jnp.bfloat16))

    flops = 2 * B_pad * (FEATURE_PAD * HIDDEN_DIM
                         + HIDDEN_DIM * HIDDEN_DIM
                         + HIDDEN_DIM * OUT_DIM)
    bytes_accessed = (x_pad.size * 2 + B_pad * OUT_DIM * 4
                      + (w1.size + w2.size + w3.size) * 2 + vecs.size * 4)

    out = pl.pallas_call(
        layernorm_net_kernel,
        out_shape=jax.ShapeDtypeStruct((B_pad, OUT_DIM), jnp.float32),
        grid_spec=pltpu.PrefetchScalarGridSpec(
            num_scalar_prefetch=0,
            grid=(B_pad // bm,),
            in_specs=[
                pl.BlockSpec((bm, FEATURE_PAD), lambda i: (i, 0)),
                pl.BlockSpec(w1.shape, lambda i: (0, 0)),   # weight-resident
                pl.BlockSpec(w2.shape, lambda i: (0, 0)),
                pl.BlockSpec(w3.shape, lambda i: (0, 0)),
                pl.BlockSpec(vecs.shape, lambda i: (0, 0)),
            ],
            out_specs=pl.BlockSpec((bm, OUT_DIM), lambda i: (i, 0)),
        ),
        compiler_params=pltpu.CompilerParams(
            dimension_semantics=("parallel",),
        ),
        cost_estimate=pl.CostEstimate(
            flops=flops, transcendentals=2 * B_pad, bytes_accessed=bytes_accessed),
    )(x_pad, w1, w2, w3, vecs)
    return out[:B]


def init_params(key):
    """Deterministic parameter init (PyTorch nn.Linear-style), stored as (in, out)."""
    ks = jax.random.split(key, 3)

    def lin(k, fan_in, fan_out):
        kw, kb = jax.random.split(k)
        bound = 1.0 / jnp.sqrt(fan_in)
        w = jax.random.uniform(kw, (fan_in, fan_out), jnp.float32, -bound, bound)
        b = jax.random.uniform(kb, (1, fan_out), jnp.float32, -bound, bound)
        return w, b

    w1, b1 = lin(ks[0], FEATURE_DIM, HIDDEN_DIM)
    w2, b2 = lin(ks[1], HIDDEN_DIM, HIDDEN_DIM)
    w3, b3 = lin(ks[2], HIDDEN_DIM, OUT_DIM)
    g1 = jnp.ones((1, HIDDEN_DIM), jnp.float32)
    be1 = jnp.zeros((1, HIDDEN_DIM), jnp.float32)
    g2 = jnp.ones((1, HIDDEN_DIM), jnp.float32)
    be2 = jnp.zeros((1, HIDDEN_DIM), jnp.float32)
    return (w1, b1, g1, be1, w2, b2, g2, be2, w3, b3)


def reference(x, params):
    """Pure-JAX reference using the same bf16-operand / f32-accumulate recipe."""
    w1, b1, g1, be1, w2, b2, g2, be2, w3, b3 = params
    xb = x.astype(jnp.bfloat16)
    w1b, w2b, w3b = (w.astype(jnp.bfloat16) for w in (w1, w2, w3))
    h = jnp.dot(xb, w1b, preferred_element_type=jnp.float32) + b1
    h = _layernorm(h, g1, be1)
    h = jnp.maximum(h, 0.0).astype(jnp.bfloat16)
    h = jnp.dot(h, w2b, preferred_element_type=jnp.float32) + b2
    h = _layernorm(h, g2, be2)
    h = jnp.maximum(h, 0.0).astype(jnp.bfloat16)
    return jnp.dot(h, w3b, preferred_element_type=jnp.float32) + b3


if __name__ == "__main__":
    key = jax.random.PRNGKey(0)
    kx, kp = jax.random.split(key)

    batch = 16
    x = jax.random.normal(kx, (batch, FEATURE_DIM), jnp.float32)
    params = init_params(kp)
    prepared = prepare_params(params)

    out = jax.block_until_ready(layernorm_net(x, prepared))
    ref = reference(x, params)

    assert out.shape == (batch, OUT_DIM)
    err = float(jnp.max(jnp.abs(out - ref)))
    assert jnp.allclose(out, ref, atol=2e-2, rtol=2e-2), err

    print("KERNEL_OK")
</pallas_src>

<mosaic_0001>
module attributes {stable_mosaic.version = 11 : i64} {
  func.func @layernorm_net_kernel(%arg0: i32, %arg1: memref<16x384xbf16, #tpu.memory_space<vmem>>, %arg2: memref<384x512xbf16, #tpu.memory_space<vmem>>, %arg3: memref<512x512xbf16, #tpu.memory_space<vmem>>, %arg4: memref<512x256xbf16, #tpu.memory_space<vmem>>, %arg5: memref<8x512xf32, #tpu.memory_space<vmem>>, %arg6: memref<16x256xf32, #tpu.memory_space<vmem>>) attributes {dimension_semantics = [#tpu.dimension_semantics<parallel>], iteration_bounds = array<i64: 1>, scalar_prefetch = 0 : i64, scratch_operands = 0 : i64, tpu.core_type = #tpu.core_type<tc>, window_params = [{transform_indices = @transform_0, window_bounds = array<i64: 16, 384>}, {pipeline_mode = #tpu.pipeline_mode<synchronous>, transform_indices = @transform_1, window_bounds = array<i64: 384, 512>}, {pipeline_mode = #tpu.pipeline_mode<synchronous>, transform_indices = @transform_2, window_bounds = array<i64: 512, 512>}, {pipeline_mode = #tpu.pipeline_mode<synchronous>, transform_indices = @transform_3, window_bounds = array<i64: 512, 256>}, {pipeline_mode = #tpu.pipeline_mode<synchronous>, transform_indices = @transform_4, window_bounds = array<i64: 8, 512>}, {transform_indices = @transform_5, window_bounds = array<i64: 16, 256>}]} {
    %c0 = arith.constant 0 : index
    %c0_0 = arith.constant 0 : index
    %0 = vector.load %arg1[%c0, %c0_0] : memref<16x384xbf16, #tpu.memory_space<vmem>>, vector<16x384xbf16>
    %c0_1 = arith.constant 0 : index
    %c0_2 = arith.constant 0 : index
    %1 = vector.load %arg5[%c0_1, %c0_2] : memref<8x512xf32, #tpu.memory_space<vmem>>, vector<1x512xf32>
    %c1 = arith.constant 1 : index
    %c0_3 = arith.constant 0 : index
    %2 = vector.load %arg5[%c1, %c0_3] : memref<8x512xf32, #tpu.memory_space<vmem>>, vector<1x512xf32>
    %c2 = arith.constant 2 : index
    %c0_4 = arith.constant 0 : index
    %3 = vector.load %arg5[%c2, %c0_4] : memref<8x512xf32, #tpu.memory_space<vmem>>, vector<1x512xf32>
    %c3 = arith.constant 3 : index
    %c0_5 = arith.constant 0 : index
    %4 = vector.load %arg5[%c3, %c0_5] : memref<8x512xf32, #tpu.memory_space<vmem>>, vector<1x512xf32>
    %c4 = arith.constant 4 : index
    %c0_6 = arith.constant 0 : index
    %5 = vector.load %arg5[%c4, %c0_6] : memref<8x512xf32, #tpu.memory_space<vmem>>, vector<1x512xf32>
    %c5 = arith.constant 5 : index
    %c0_7 = arith.constant 0 : index
    %6 = vector.load %arg5[%c5, %c0_7] : memref<8x512xf32, #tpu.memory_space<vmem>>, vector<1x512xf32>
    %c6 = arith.constant 6 : index
    %c0_8 = arith.constant 0 : index
    %7 = vector.load %arg5[%c6, %c0_8] : memref<8x512xf32, #tpu.memory_space<vmem>>, vector<1x256xf32>
    %c0_9 = arith.constant 0 : index
    %c0_10 = arith.constant 0 : index
    %8 = vector.load %arg2[%c0_9, %c0_10] : memref<384x512xbf16, #tpu.memory_space<vmem>>, vector<384x512xbf16>
    %cst = arith.constant dense<0.000000e+00> : vector<16x512xf32>
    %9 = tpu.matmul %0, %8, %cst {dimension_numbers = #tpu.dot_dimension_numbers<[1], [0], [0], [1], [0, 0, 1, 1], [], []>} : vector<16x384xbf16>, vector<384x512xbf16>, vector<16x512xf32> -> vector<16x512xf32>
    %10 = vector.broadcast %1 : vector<1x512xf32> to vector<16x512xf32>
    %11 = arith.addf %9, %10 : vector<16x512xf32>
    %cst_11 = arith.constant dense<0.000000e+00> : vector<16xf32>
    %12 = vector.multi_reduction <add>, %11, %cst_11 [1] : vector<16x512xf32> to vector<16xf32>
    %13 = vector.shape_cast %12 : vector<16xf32> to vector<16x1xf32>
    %cst_12 = arith.constant 5.120000e+02 : f32
    %14 = vector.broadcast %cst_12 : f32 to vector<16x1xf32>
    %15 = arith.divf %13, %14 : vector<16x1xf32>
    %16 = vector.broadcast %15 : vector<16x1xf32> to vector<16x512xf32>
    %17 = arith.subf %11, %16 : vector<16x512xf32>
    %18 = arith.mulf %17, %17 : vector<16x512xf32>
    %cst_13 = arith.constant dense<0.000000e+00> : vector<16xf32>
    %19 = vector.multi_reduction <add>, %18, %cst_13 [1] : vector<16x512xf32> to vector<16xf32>
    %20 = vector.shape_cast %19 : vector<16xf32> to vector<16x1xf32>
    %cst_14 = arith.constant 5.120000e+02 : f32
    %21 = vector.broadcast %cst_14 : f32 to vector<16x1xf32>
    %22 = arith.divf %20, %21 : vector<16x1xf32>
    %23 = vector.broadcast %15 : vector<16x1xf32> to vector<16x512xf32>
    %24 = arith.subf %11, %23 : vector<16x512xf32>
    %cst_15 = arith.constant 9.99999974E-6 : f32
    %25 = vector.broadcast %cst_15 : f32 to vector<16x1xf32>
    %26 = arith.addf %22, %25 : vector<16x1xf32>
    %27 = math.rsqrt %26 : vector<16x1xf32>
    %28 = vector.broadcast %27 : vector<16x1xf32> to vector<16x512xf32>
    %29 = arith.mulf %24, %28 : vector<16x512xf32>
    %30 = vector.broadcast %2 : vector<1x512xf32> to vector<16x512xf32>
    %31 = arith.mulf %29, %30 : vector<16x512xf32>
    %32 = vector.broadcast %3 : vector<1x512xf32> to vector<16x512xf32>
    %33 = arith.addf %31, %32 : vector<16x512xf32>
    %cst_16 = arith.constant 0.000000e+00 : f32
    %34 = vector.broadcast %cst_16 : f32 to vector<16x512xf32>
    %35 = arith.maximumf %33, %34 : vector<16x512xf32>
    %36 = arith.truncf %35 : vector<16x512xf32> to vector<16x512xbf16>
    %c0_17 = arith.constant 0 : index
    %c0_18 = arith.constant 0 : index
    %37 = vector.load %arg3[%c0_17, %c0_18] : memref<512x512xbf16, #tpu.memory_space<vmem>>, vector<512x512xbf16>
    %cst_19 = arith.constant dense<0.000000e+00> : vector<16x512xf32>
    %38 = tpu.matmul %36, %37, %cst_19 {dimension_numbers = #tpu.dot_dimension_numbers<[1], [0], [0], [1], [0, 0, 1, 1], [], []>} : vector<16x512xbf16>, vector<512x512xbf16>, vector<16x512xf32> -> vector<16x512xf32>
    %39 = vector.broadcast %4 : vector<1x512xf32> to vector<16x512xf32>
    %40 = arith.addf %38, %39 : vector<16x512xf32>
    %cst_20 = arith.constant dense<0.000000e+00> : vector<16xf32>
    %41 = vector.multi_reduction <add>, %40, %cst_20 [1] : vector<16x512xf32> to vector<16xf32>
    %42 = vector.shape_cast %41 : vector<16xf32> to vector<16x1xf32>
    %cst_21 = arith.constant 5.120000e+02 : f32
    %43 = vector.broadcast %cst_21 : f32 to vector<16x1xf32>
    %44 = arith.divf %42, %43 : vector<16x1xf32>
    %45 = vector.broadcast %44 : vector<16x1xf32> to vector<16x512xf32>
    %46 = arith.subf %40, %45 : vector<16x512xf32>
    %47 = arith.mulf %46, %46 : vector<16x512xf32>
    %cst_22 = arith.constant dense<0.000000e+00> : vector<16xf32>
    %48 = vector.multi_reduction <add>, %47, %cst_22 [1] : vector<16x512xf32> to vector<16xf32>
    %49 = vector.shape_cast %48 : vector<16xf32> to vector<16x1xf32>
    %cst_23 = arith.constant 5.120000e+02 : f32
    %50 = vector.broadcast %cst_23 : f32 to vector<16x1xf32>
    %51 = arith.divf %49, %50 : vector<16x1xf32>
    %52 = vector.broadcast %44 : vector<16x1xf32> to vector<16x512xf32>
    %53 = arith.subf %40, %52 : vector<16x512xf32>
    %cst_24 = arith.constant 9.99999974E-6 : f32
    %54 = vector.broadcast %cst_24 : f32 to vector<16x1xf32>
    %55 = arith.addf %51, %54 : vector<16x1xf32>
    %56 = math.rsqrt %55 : vector<16x1xf32>
    %57 = vector.broadcast %56 : vector<16x1xf32> to vector<16x512xf32>
    %58 = arith.mulf %53, %57 : vector<16x512xf32>
    %59 = vector.broadcast %5 : vector<1x512xf32> to vector<16x512xf32>
    %60 = arith.mulf %58, %59 : vector<16x512xf32>
    %61 = vector.broadcast %6 : vector<1x512xf32> to vector<16x512xf32>
    %62 = arith.addf %60, %61 : vector<16x512xf32>
    %cst_25 = arith.constant 0.000000e+00 : f32
    %63 = vector.broadcast %cst_25 : f32 to vector<16x512xf32>
    %64 = arith.maximumf %62, %63 : vector<16x512xf32>
    %65 = arith.truncf %64 : vector<16x512xf32> to vector<16x512xbf16>
    %c0_26 = arith.constant 0 : index
    %c0_27 = arith.constant 0 : index
    %66 = vector.load %arg4[%c0_26, %c0_27] : memref<512x256xbf16, #tpu.memory_space<vmem>>, vector<512x256xbf16>
    %cst_28 = arith.constant dense<0.000000e+00> : vector<16x256xf32>
    %67 = tpu.matmul %65, %66, %cst_28 {dimension_numbers = #tpu.dot_dimension_numbers<[1], [0], [0], [1], [0, 0, 1, 1], [], []>} : vector<16x512xbf16>, vector<512x256xbf16>, vector<16x256xf32> -> vector<16x256xf32>
    %68 = vector.broadcast %7 : vector<1x256xf32> to vector<16x256xf32>
    %69 = arith.addf %67, %68 : vector<16x256xf32>
    %c0_29 = arith.constant 0 : index
    %c0_30 = arith.constant 0 : index
    %70 = vector.load %arg6[%c0_29, %c0_30] : memref<16x256xf32, #tpu.memory_space<vmem>>, vector<16x256xf32>
    tpu.vector_store %arg6[%c0_29, %c0_30], %69 {strides = array<i32>} : memref<16x256xf32, #tpu.memory_space<vmem>>, vector<16x256xf32>,
    return
  }
  func.func @transform_0(%arg0: i32) -> (i32, i32) {
    %c0_i32 = arith.constant 0 : i32
    %c0_i32_0 = arith.constant 0 : i32
    return %arg0, %c0_i32 : i32, i32
  }
  func.func @transform_1(%arg0: i32) -> (i32, i32) {
    %c0_i32 = arith.constant 0 : i32
    %c0_i32_0 = arith.constant 0 : i32
    %c0_i32_1 = arith.constant 0 : i32
    return %c0_i32, %c0_i32_0 : i32, i32
  }
  func.func @transform_2(%arg0: i32) -> (i32, i32) {
    %c0_i32 = arith.constant 0 : i32
    %c0_i32_0 = arith.constant 0 : i32
    %c0_i32_1 = arith.constant 0 : i32
    return %c0_i32, %c0_i32_0 : i32, i32
  }
  func.func @transform_3(%arg0: i32) -> (i32, i32) {
    %c0_i32 = arith.constant 0 : i32
    %c0_i32_0 = arith.constant 0 : i32
    %c0_i32_1 = arith.constant 0 : i32
    return %c0_i32, %c0_i32_0 : i32, i32
  }
  func.func @transform_4(%arg0: i32) -> (i32, i32) {
    %c0_i32 = arith.constant 0 : i32
    %c0_i32_0 = arith.constant 0 : i32
    %c0_i32_1 = arith.constant 0 : i32
    return %c0_i32, %c0_i32_0 : i32, i32
  }
  func.func @transform_5(%arg0: i32) -> (i32, i32) {
    %c0_i32 = arith.constant 0 : i32
    %c0_i32_0 = arith.constant 0 : i32
    return %arg0, %c0_i32 : i32, i32
  }
}

</mosaic_0001>

<llo_original>
// kernel: layernorm_net.1
$region0: #{layernorm_net.1}
  #allocation0 [shape = 'u32[]', space=smem, size = 0x4, offset = 0x4, fixed_abs, tag = 'smem constant byte address 0x4 - core index']
  #allocation1 [shape = 'u32[144,128]{1,0:T(1,128)}', space=vmem, size = 0x12000, scoped, tag = 'internal scratch']
  %s0 = inlined_call_operand.vmem [shape: bf16[16,384], index: 0, kind: input, shape index: {}]
  %s1 = inlined_call_operand.hbm [shape: bf16[384,512], index: 1, kind: input, shape index: {}]
  %s2 = inlined_call_operand.hbm [shape: bf16[512,512], index: 2, kind: input, shape index: {}]
  %s3 = inlined_call_operand.hbm [shape: bf16[512,256], index: 3, kind: input, shape index: {}]
  %s4 = inlined_call_operand.vmem [shape: f32[8,512], index: 4, kind: input, shape index: {}]
  %s5 = inlined_call_operand.hbm [shape: f32[16,256], index: 5, kind: output, shape index: {}]
  %s6 = sld [smem:[#allocation0]]
  $region42: #{layernorm_net.1} parent=0
    _
  %s8 = ssub.s32 1, %s6
  %s9 = scalar_select 0, %s8, %s6
  $region1: #{layernorm_net.1} parent=0
    #allocation2 [shape = 'u8[393216]{0}', space=vmem, size = 0x60000, scoped, tag = 'input window, operand 1, single buffered']
    #allocation3 [shape = 's32[1]{0}', space=sflag, size = 0x4, scoped, tag = 'scoped memory for layernorm_net.1']
    #allocation4 [shape = 's32[1]{0}', space=sflag, size = 0x4, scoped, tag = 'scoped memory for layernorm_net.1']
    #allocation5 [shape = 'u8[524288]{0}', space=vmem, size = 0x80000, scoped, tag = 'input window, operand 2, single buffered']
    #allocation6 [shape = 's32[1]{0}', space=sflag, size = 0x4, scoped, tag = 'scoped memory for layernorm_net.1']
    #allocation7 [shape = 'u8[262144]{0}', space=vmem, size = 0x40000, scoped, tag = 'input window, operand 3, single buffered']
    #allocation8 [shape = 'u8[16384]{0}', space=vmem, size = 0x4000, scoped, tag = 'output window, operand 0, single buffered']
    %10 = vsyncpa [#allocation3], 0
    %11 = vsyncpa [#allocation6], 0
    %12 = vsyncpa [#allocation4], 0
    // Predicated region
    $region2: #{layernorm_net.1} parent=1 // pred_check
      _
    $region3: #{layernorm_net.1} parent=1 // pred_check_branch
      %14 = sbr.rel (0) target = $region5
    $region4: #{layernorm_net.1} parent=1 // pred_region
      _
    $region5: #{layernorm_net.1} parent=1 // pred_fallthru
      _
    // Predicated region
    $region6: #{layernorm_net.1} parent=1 // pred_check
      _
    $region7: #{layernorm_net.1} parent=1 // pred_check_branch
      %16 = sbr.rel (0) target = $region9
    $region8: #{layernorm_net.1} parent=1 // pred_region
      %s18 = ssub.s32 12288, 12288
      %19 = vsyncadd [#allocation3], %s18
      %s20 = sshll.u32 [#allocation2], 4
      %s21 = int_to_ptr.vmem [resolvable:$true] %s20
      %26 = dma.hbm_to_vmem [thread:$0]  %s1, 12288, %s21, [#allocation3], 256, 256, 16
    $region9: #{layernorm_net.1} parent=1 // pred_fallthru
      _
    // Predicated region
    $region10: #{layernorm_net.1} parent=1 // pred_check
      _
    $region11: #{layernorm_net.1} parent=1 // pred_check_branch
      %28 = sbr.rel (0) target = $region13
    $region12: #{layernorm_net.1} parent=1 // pred_region
      %s30 = ssub.s32 16384, 16384
      %31 = vsyncadd [#allocation6], %s30
      %s32 = sshll.u32 [#allocation5], 4
      %s33 = int_to_ptr.vmem [resolvable:$true] %s32
      %38 = dma.hbm_to_vmem [thread:$0]  %s2, 16384, %s33, [#allocation6], 256, 256, 16
    $region13: #{layernorm_net.1} parent=1 // pred_fallthru
      _
    // Predicated region
    $region14: #{layernorm_net.1} parent=1 // pred_check
      _
    $region15: #{layernorm_net.1} parent=1 // pred_check_branch
      %40 = sbr.rel (0) target = $region17
    $region16: #{layernorm_net.1} parent=1 // pred_region
      %s42 = ssub.s32 8192, 8192
      %43 = vsyncadd [#allocation6], %s42
      %s44 = sshll.u32 [#allocation7], 4
      %s45 = int_to_ptr.vmem [resolvable:$true] %s44
      %50 = dma.hbm_to_vmem [thread:$0]  %s3, 8192, %s45, [#allocation6], 128, 128, 8
    $region17: #{layernorm_net.1} parent=1 // pred_fallthru
      _
    // Predicated region
    $region18: #{layernorm_net.1} parent=1 // pred_check
      _
    $region19: #{layernorm_net.1} parent=1 // pred_check_branch
      %52 = sbr.rel (0) target = $region21
    $region20: #{layernorm_net.1} parent=1 // pred_region
      _
    $region21: #{layernorm_net.1} parent=1 // pred_fallthru
      _
    // Predicated region
    $region22: #{layernorm_net.1} parent=1 // pred_check
      _
    $region23: #{layernorm_net.1} parent=1 // pred_check_branch
      %54 = sbr.rel (0) target = $region25
    $region24: #{layernorm_net.1} parent=1 // pred_region
      %55 = dma.done [#allocation3], 12288
    $region25: #{layernorm_net.1} parent=1 // pred_fallthru
      _
    // Predicated region
    $region26: #{layernorm_net.1} parent=1 // pred_check
      _
    $region27: #{layernorm_net.1} parent=1 // pred_check_branch
      %57 = sbr.rel (0) target = $region29
    $region28: #{layernorm_net.1} parent=1 // pred_region
      %58 = dma.done [#allocation6], 16384
    $region29: #{layernorm_net.1} parent=1 // pred_fallthru
      _
    // Predicated region
    $region30: #{layernorm_net.1} parent=1 // pred_check
      _
    $region31: #{layernorm_net.1} parent=1 // pred_check_branch
      %60 = sbr.rel (0) target = $region33
    $region32: #{layernorm_net.1} parent=1 // pred_region
      %61 = dma.done [#allocation6], 8192
    $region33: #{layernorm_net.1} parent=1 // pred_fallthru
      _
    %v63 = vld [vmem:[%s0] sm:$0xff]
    %v64 = vld [vmem:[%s0 + $0x8] sm:$0xf]
    %v65 = vld [vmem:[%s0 + $0xc] sm:$0xff]
    %v66 = vld [vmem:[%s0 + $0x14] sm:$0xf]
    %v67 = vld [vmem:[%s4] ss:$8 sm:$0xf]
    %s68 = scalar_lea.vmem %s4, 1
    %v69 = vld [vmem:[%s68] ss:$8 sm:$0xf]
    %s70 = scalar_lea.vmem %s4, 2
    %v71 = vld [vmem:[%s70] ss:$8 sm:$0xf]
    %s72 = scalar_lea.vmem %s4, 3
    %v73 = vld [vmem:[%s72] ss:$8 sm:$0xf]
    %s74 = scalar_lea.vmem %s4, 4
    %v75 = vld [vmem:[%s74] ss:$8 sm:$0xf]
    %s76 = scalar_lea.vmem %s4, 5
    %v77 = vld [vmem:[%s76] ss:$8 sm:$0xf]
    %s78 = scalar_lea.vmem %s4, 6
    %v79 = vld [vmem:[%s78] ss:$8 sm:$0x3]
    %v80 = vld [vmem:[#allocation2] sm:$0xff]
    %v81 = vld [vmem:[#allocation2 + $0x8] sm:$0xff]
    %v82 = vld [vmem:[#allocation2 + $0x10] sm:$0xff]
    %v83 = vld [vmem:[#allocation2 + $0x18] sm:$0xff]
    %v84 = vld [vmem:[#allocation2 + $0x20] sm:$0xff]
    %v85 = vld [vmem:[#allocation2 + $0x28] sm:$0xff]
    %v86 = vld [vmem:[#allocation2 + $0x30] sm:$0xff]
    %v87 = vld [vmem:[#allocation2 + $0x38] sm:$0xff]
    %v88 = vld [vmem:[#allocation2 + $0x40] sm:$0xff]
    %v89 = vld [vmem:[#allocation2 + $0x48] sm:$0xff]
    %v90 = vld [vmem:[#allocation2 + $0x50] sm:$0xff]
    %v91 = vld [vmem:[#allocation2 + $0x58] sm:$0xff]
    %v92 = vld [vmem:[#allocation2 + $0x60] sm:$0xff]
    %v93 = vld [vmem:[#allocation2 + $0x68] sm:$0xff]
    %v94 = vld [vmem:[#allocation2 + $0x70] sm:$0xff]
    %v95 = vld [vmem:[#allocation2 + $0x78] sm:$0xff]
    %v96 = vld [vmem:[#allocation2 + $0x80] sm:$0xff]
    %v97 = vld [vmem:[#allocation2 + $0x88] sm:$0xff]
    %v98 = vld [vmem:[#allocation2 + $0x90] sm:$0xff]
    %v99 = vld [vmem:[#allocation2 + $0x98] sm:$0xff]
    %v100 = vld [vmem:[#allocation2 + $0xa0] sm:$0xff]
    %v101 = vld [vmem:[#allocation2 + $0xa8] sm:$0xff]
    %v102 = vld [vmem:[#allocation2 + $0xb0] sm:$0xff]
    %v103 = vld [vmem:[#allocation2 + $0xb8] sm:$0xff]
    %v104 = vld [vmem:[#allocation2 + $0xc0] sm:$0xff]
    %v105 = vld [vmem:[#allocation2 + $0xc8] sm:$0xff]
    %v106 = vld [vmem:[#allocation2 + $0xd0] sm:$0xff]
    %v107 = vld [vmem:[#allocation2 + $0xd8] sm:$0xff]
    %v108 = vld [vmem:[#allocation2 + $0xe0] sm:$0xff]
    %v109 = vld [vmem:[#allocation2 + $0xe8] sm:$0xff]
    %v110 = vld [vmem:[#allocation2 + $0xf0] sm:$0xff]
    %v111 = vld [vmem:[#allocation2 + $0xf8] sm:$0xff]
    %v112 = vld [vmem:[#allocation2 + $0x100] sm:$0xff]
    %v113 = vld [vmem:[#allocation2 + $0x108] sm:$0xff]
    %v114 = vld [vmem:[#allocation2 + $0x110] sm:$0xff]
    %v115 = vld [vmem:[#allocation2 + $0x118] sm:$0xff]
    %v116 = vld [vmem:[#allocation2 + $0x120] sm:$0xff]
    %v117 = vld [vmem:[#allocation2 + $0x128] sm:$0xff]
    %v118 = vld [vmem:[#allocation2 + $0x130] sm:$0xff]
    %v119 = vld [vmem:[#allocation2 + $0x138] sm:$0xff]
    %v120 = vld [vmem:[#allocation2 + $0x140] sm:$0xff]
    %v121 = vld [vmem:[#allocation2 + $0x148] sm:$0xff]
    %v122 = vld [vmem:[#allocation2 + $0x150] sm:$0xff]
    %v123 = vld [vmem:[#allocation2 + $0x158] sm:$0xff]
    %v124 = vld [vmem:[#allocation2 + $0x160] sm:$0xff]
    %v125 = vld [vmem:[#allocation2 + $0x168] sm:$0xff]
    %v126 = vld [vmem:[#allocation2 + $0x170] sm:$0xff]
    %v127 = vld [vmem:[#allocation2 + $0x178] sm:$0xff]
    %v128 = vld [vmem:[#allocation2 + $0x180] sm:$0xff]
    %v129 = vld [vmem:[#allocation2 + $0x188] sm:$0xff]
    %v130 = vld [vmem:[#allocation2 + $0x190] sm:$0xff]
    %v131 = vld [vmem:[#allocation2 + $0x198] sm:$0xff]
    %v132 = vld [vmem:[#allocation2 + $0x1a0] sm:$0xff]
    %v133 = vld [vmem:[#allocation2 + $0x1a8] sm:$0xff]
    %v134 = vld [vmem:[#allocation2 + $0x1b0] sm:$0xff]
    %v135 = vld [vmem:[#allocation2 + $0x1b8] sm:$0xff]
    %v136 = vld [vmem:[#allocation2 + $0x1c0] sm:$0xff]
    %v137 = vld [vmem:[#allocation2 + $0x1c8] sm:$0xff]
    %v138 = vld [vmem:[#allocation2 + $0x1d0] sm:$0xff]
    %v139 = vld [vmem:[#allocation2 + $0x1d8] sm:$0xff]
    %v140 = vld [vmem:[#allocation2 + $0x1e0] sm:$0xff]
    %v141 = vld [vmem:[#allocation2 + $0x1e8] sm:$0xff]
    %v142 = vld [vmem:[#allocation2 + $0x1f0] sm:$0xff]
    %v143 = vld [vmem:[#allocation2 + $0x1f8] sm:$0xff]
    %v144 = vld [vmem:[#allocation2 + $0x200] sm:$0xff]
    %v145 = vld [vmem:[#allocation2 + $0x208] sm:$0xff]
    %v146 = vld [vmem:[#allocation2 + $0x210] sm:$0xff]
    %v147 = vld [vmem:[#allocation2 + $0x218] sm:$0xff]
    %v148 = vld [vmem:[#allocation2 + $0x220] sm:$0xff]
    %v149 = vld [vmem:[#allocation2 + $0x228] sm:$0xff]
    %v150 = vld [vmem:[#allocation2 + $0x230] sm:$0xff]
    %v151 = vld [vmem:[#allocation2 + $0x238] sm:$0xff]
    %v152 = vld [vmem:[#allocation2 + $0x240] sm:$0xff]
    %v153 = vld [vmem:[#allocation2 + $0x248] sm:$0xff]
    %v154 = vld [vmem:[#allocation2 + $0x250] sm:$0xff]
    %v155 = vld [vmem:[#allocation2 + $0x258] sm:$0xff]
    %v156 = vld [vmem:[#allocation2 + $0x260] sm:$0xff]
    %v157 = vld [vmem:[#allocation2 + $0x268] sm:$0xff]
    %v158 = vld [vmem:[#allocation2 + $0x270] sm:$0xff]
    %v159 = vld [vmem:[#allocation2 + $0x278] sm:$0xff]
    %v160 = vld [vmem:[#allocation2 + $0x280] sm:$0xff]
    %v161 = vld [vmem:[#allocation2 + $0x288] sm:$0xff]
    %v162 = vld [vmem:[#allocation2 + $0x290] sm:$0xff]
    %v163 = vld [vmem:[#allocation2 + $0x298] sm:$0xff]
    %v164 = vld [vmem:[#allocation2 + $0x2a0] sm:$0xff]
    %v165 = vld [vmem:[#allocation2 + $0x2a8] sm:$0xff]
    %v166 = vld [vmem:[#allocation2 + $0x2b0] sm:$0xff]
    %v167 = vld [vmem:[#allocation2 + $0x2b8] sm:$0xff]
    %v168 = vld [vmem:[#allocation2 + $0x2c0] sm:$0xff]
    %v169 = vld [vmem:[#allocation2 + $0x2c8] sm:$0xff]
    %v170 = vld [vmem:[#allocation2 + $0x2d0] sm:$0xff]
    %v171 = vld [vmem:[#allocation2 + $0x2d8] sm:$0xff]
    %v172 = vld [vmem:[#allocation2 + $0x2e0] sm:$0xff]
    %v173 = vld [vmem:[#allocation2 + $0x2e8] sm:$0xff]
    %v174 = vld [vmem:[#allocation2 + $0x2f0] sm:$0xff]
    %v175 = vld [vmem:[#allocation2 + $0x2f8] sm:$0xff]
    %v177 = vlaneseq
    %v178 = vshrl.u32 %v177, 7
    %v179 = vsub.s32 0, %v178
    %v180 = vrot.slane %v67, %v179
    %v181 = vlaneseq
    %v182 = vshrl.u32 %v181, 7
    %v183 = vsub.s32 1, %v182
    %v184 = vrot.slane %v67, %v183
    %v185 = vlaneseq
    %v186 = vshrl.u32 %v185, 7
    %v187 = vsub.s32 2, %v186
    %v188 = vrot.slane %v67, %v187
    %v189 = vlaneseq
    %v190 = vshrl.u32 %v189, 7
    %v191 = vsub.s32 3, %v190
    %v192 = vrot.slane %v67, %v191
    %v201 = vunpack.c.l.b16 %v63
    %v202 = vunpack.c.h.b16 %v63
    %v203 = vunpack.c.l.b16 %v64
    %v204 = vunpack.c.l.b16 %v65
    %v205 = vunpack.c.h.b16 %v65
    %v206 = vunpack.c.l.b16 %v66
    %v207 = vpack.c.b16 %v204, %v201
    %v208 = vpack.c.b16 %v205, %v202
    %v209 = vpack.c.b16 %v206, %v203
    %v309 = vunpack.c.l.b16 %v80
    %v310 = vunpack.c.h.b16 %v80
    %v311 = vunpack.c.l.b16 %v81
    %v312 = vunpack.c.h.b16 %v81
    %v313 = vunpack.c.l.b16 %v82
    %v314 = vunpack.c.h.b16 %v82
    %v315 = vunpack.c.l.b16 %v83
    %v316 = vunpack.c.h.b16 %v83
    %v317 = vunpack.c.l.b16 %v84
    %v318 = vunpack.c.h.b16 %v84
    %v319 = vunpack.c.l.b16 %v85
    %v320 = vunpack.c.h.b16 %v85
    %v321 = vunpack.c.l.b16 %v86
    %v322 = vunpack.c.h.b16 %v86
    %v323 = vunpack.c.l.b16 %v87
    %v324 = vunpack.c.h.b16 %v87
    %v325 = vunpack.c.l.b16 %v88
    %v326 = vunpack.c.h.b16 %v88
    %v327 = vunpack.c.l.b16 %v89
    %v328 = vunpack.c.h.b16 %v89
    %v329 = vunpack.c.l.b16 %v90
    %v330 = vunpack.c.h.b16 %v90
    %v331 = vunpack.c.l.b16 %v91
    %v332 = vunpack.c.h.b16 %v91
    %v333 = vunpack.c.l.b16 %v92
    %v334 = vunpack.c.h.b16 %v92
    %v335 = vunpack.c.l.b16 %v93
    %v336 = vunpack.c.h.b16 %v93
    %v337 = vunpack.c.l.b16 %v94
    %v338 = vunpack.c.h.b16 %v94
    %v339 = vunpack.c.l.b16 %v95
    %v340 = vunpack.c.h.b16 %v95
    %v341 = vunpack.c.l.b16 %v96
    %v342 = vunpack.c.h.b16 %v96
    %v343 = vunpack.c.l.b16 %v97
    %v344 = vunpack.c.h.b16 %v97
    %v345 = vunpack.c.l.b16 %v98
    %v346 = vunpack.c.h.b16 %v98
    %v347 = vunpack.c.l.b16 %v99
    %v348 = vunpack.c.h.b16 %v99
    %v349 = vunpack.c.l.b16 %v100
    %v350 = vunpack.c.h.b16 %v100
    %v351 = vunpack.c.l.b16 %v101
    %v352 = vunpack.c.h.b16 %v101
    %v353 = vunpack.c.l.b16 %v102
    %v354 = vunpack.c.h.b16 %v102
    %v355 = vunpack.c.l.b16 %v103
    %v356 = vunpack.c.h.b16 %v103
    %v357 = vunpack.c.l.b16 %v104
    %v358 = vunpack.c.h.b16 %v104
    %v359 = vunpack.c.l.b16 %v105
    %v360 = vunpack.c.h.b16 %v105
    %v361 = vunpack.c.l.b16 %v106
    %v362 = vunpack.c.h.b16 %v106
    %v363 = vunpack.c.l.b16 %v107
    %v364 = vunpack.c.h.b16 %v107
    %v365 = vunpack.c.l.b16 %v108
    %v366 = vunpack.c.h.b16 %v108
    %v367 = vunpack.c.l.b16 %v109
    %v368 = vunpack.c.h.b16 %v109
    %v369 = vunpack.c.l.b16 %v110
    %v370 = vunpack.c.h.b16 %v110
    %v371 = vunpack.c.l.b16 %v111
    %v372 = vunpack.c.h.b16 %v111
    %v373 = vunpack.c.l.b16 %v112
    %v374 = vunpack.c.h.b16 %v112
    %v375 = vunpack.c.l.b16 %v113
    %v376 = vunpack.c.h.b16 %v113
    %v377 = vunpack.c.l.b16 %v114
    %v378 = vunpack.c.h.b16 %v114
    %v379 = vunpack.c.l.b16 %v115
    %v380 = vunpack.c.h.b16 %v115
    %v381 = vunpack.c.l.b16 %v116
    %v382 = vunpack.c.h.b16 %v116
    %v383 = vunpack.c.l.b16 %v117
    %v384 = vunpack.c.h.b16 %v117
    %v385 = vunpack.c.l.b16 %v118
    %v386 = vunpack.c.h.b16 %v118
    %v387 = vunpack.c.l.b16 %v119
    %v388 = vunpack.c.h.b16 %v119
    %v389 = vunpack.c.l.b16 %v120
    %v390 = vunpack.c.h.b16 %v120
    %v391 = vunpack.c.l.b16 %v121
    %v392 = vunpack.c.h.b16 %v121
    %v393 = vunpack.c.l.b16 %v122
    %v394 = vunpack.c.h.b16 %v122
    %v395 = vunpack.c.l.b16 %v123
    %v396 = vunpack.c.h.b16 %v123
    %v397 = vunpack.c.l.b16 %v124
    %v398 = vunpack.c.h.b16 %v124
    %v399 = vunpack.c.l.b16 %v125
    %v400 = vunpack.c.h.b16 %v125
    %v401 = vunpack.c.l.b16 %v126
    %v402 = vunpack.c.h.b16 %v126
    %v403 = vunpack.c.l.b16 %v127
    %v404 = vunpack.c.h.b16 %v127
    %v405 = vunpack.c.l.b16 %v128
    %v406 = vunpack.c.h.b16 %v128
    %v407 = vunpack.c.l.b16 %v129
    %v408 = vunpack.c.h.b16 %v129
    %v409 = vunpack.c.l.b16 %v130
    %v410 = vunpack.c.h.b16 %v130
    %v411 = vunpack.c.l.b16 %v131
    %v412 = vunpack.c.h.b16 %v131
    %v413 = vunpack.c.l.b16 %v132
    %v414 = vunpack.c.h.b16 %v132
    %v415 = vunpack.c.l.b16 %v133
    %v416 = vunpack.c.h.b16 %v133
    %v417 = vunpack.c.l.b16 %v134
    %v418 = vunpack.c.h.b16 %v134
    %v419 = vunpack.c.l.b16 %v135
    %v420 = vunpack.c.h.b16 %v135
    %v421 = vunpack.c.l.b16 %v136
    %v422 = vunpack.c.h.b16 %v136
    %v423 = vunpack.c.l.b16 %v137
    %v424 = vunpack.c.h.b16 %v137
    %v425 = vunpack.c.l.b16 %v138
    %v426 = vunpack.c.h.b16 %v138
    %v427 = vunpack.c.l.b16 %v139
    %v428 = vunpack.c.h.b16 %v139
    %v429 = vunpack.c.l.b16 %v140
    %v430 = vunpack.c.h.b16 %v140
    %v431 = vunpack.c.l.b16 %v141
    %v432 = vunpack.c.h.b16 %v141
    %v433 = vunpack.c.l.b16 %v142
    %v434 = vunpack.c.h.b16 %v142
    %v435 = vunpack.c.l.b16 %v143
    %v436 = vunpack.c.h.b16 %v143
    %v437 = vunpack.c.l.b16 %v144
    %v438 = vunpack.c.h.b16 %v144
    %v439 = vunpack.c.l.b16 %v145
    %v440 = vunpack.c.h.b16 %v145
    %v441 = vunpack.c.l.b16 %v146
    %v442 = vunpack.c.h.b16 %v146
    %v443 = vunpack.c.l.b16 %v147
    %v444 = vunpack.c.h.b16 %v147
    %v445 = vunpack.c.l.b16 %v148
    %v446 = vunpack.c.h.b16 %v148
    %v447 = vunpack.c.l.b16 %v149
    %v448 = vunpack.c.h.b16 %v149
    %v449 = vunpack.c.l.b16 %v150
    %v450 = vunpack.c.h.b16 %v150
    %v451 = vunpack.c.l.b16 %v151
    %v452 = vunpack.c.h.b16 %v151
    %v453 = vunpack.c.l.b16 %v152
    %v454 = vunpack.c.h.b16 %v152
    %v455 = vunpack.c.l.b16 %v153
    %v456 = vunpack.c.h.b16 %v153
    %v457 = vunpack.c.l.b16 %v154
    %v458 = vunpack.c.h.b16 %v154
    %v459 = vunpack.c.l.b16 %v155
    %v460 = vunpack.c.h.b16 %v155
    %v461 = vunpack.c.l.b16 %v156
    %v462 = vunpack.c.h.b16 %v156
    %v463 = vunpack.c.l.b16 %v157
    %v464 = vunpack.c.h.b16 %v157
    %v465 = vunpack.c.l.b16 %v158
    %v466 = vunpack.c.h.b16 %v158
    %v467 = vunpack.c.l.b16 %v159
    %v468 = vunpack.c.h.b16 %v159
    %v469 = vunpack.c.l.b16 %v160
    %v470 = vunpack.c.h.b16 %v160
    %v471 = vunpack.c.l.b16 %v161
    %v472 = vunpack.c.h.b16 %v161
    %v473 = vunpack.c.l.b16 %v162
    %v474 = vunpack.c.h.b16 %v162
    %v475 = vunpack.c.l.b16 %v163
    %v476 = vunpack.c.h.b16 %v163
    %v477 = vunpack.c.l.b16 %v164
    %v478 = vunpack.c.h.b16 %v164
    %v479 = vunpack.c.l.b16 %v165
    %v480 = vunpack.c.h.b16 %v165
    %v481 = vunpack.c.l.b16 %v166
    %v482 = vunpack.c.h.b16 %v166
    %v483 = vunpack.c.l.b16 %v167
    %v484 = vunpack.c.h.b16 %v167
    %v485 = vunpack.c.l.b16 %v168
    %v486 = vunpack.c.h.b16 %v168
    %v487 = vunpack.c.l.b16 %v169
    %v488 = vunpack.c.h.b16 %v169
    %v489 = vunpack.c.l.b16 %v170
    %v490 = vunpack.c.h.b16 %v170
    %v491 = vunpack.c.l.b16 %v171
    %v492 = vunpack.c.h.b16 %v171
    %v493 = vunpack.c.l.b16 %v172
    %v494 = vunpack.c.h.b16 %v172
    %v495 = vunpack.c.l.b16 %v173
    %v496 = vunpack.c.h.b16 %v173
    %v497 = vunpack.c.l.b16 %v174
    %v498 = vunpack.c.h.b16 %v174
    %v499 = vunpack.c.l.b16 %v175
    %v500 = vunpack.c.h.b16 %v175
    %v501 = vpack.c.b16 %v313, %v309
    %v502 = vpack.c.b16 %v314, %v310
    %v503 = vpack.c.b16 %v315, %v311
    %v504 = vpack.c.b16 %v316, %v312
    %v505 = vpack.c.b16 %v321, %v317
    %v506 = vpack.c.b16 %v322, %v318
    %v507 = vpack.c.b16 %v323, %v319
    %v508 = vpack.c.b16 %v324, %v320
    %v509 = vpack.c.b16 %v329, %v325
    %v510 = vpack.c.b16 %v330, %v326
    %v511 = vpack.c.b16 %v331, %v327
    %v512 = vpack.c.b16 %v332, %v328
    %v513 = vpack.c.b16 %v337, %v333
    %v514 = vpack.c.b16 %v338, %v334
    %v515 = vpack.c.b16 %v339, %v335
    %v516 = vpack.c.b16 %v340, %v336
    %v517 = vpack.c.b16 %v345, %v341
    %v518 = vpack.c.b16 %v346, %v342
    %v519 = vpack.c.b16 %v347, %v343
    %v520 = vpack.c.b16 %v348, %v344
    %v521 = vpack.c.b16 %v353, %v349
    %v522 = vpack.c.b16 %v354, %v350
    %v523 = vpack.c.b16 %v355, %v351
    %v524 = vpack.c.b16 %v356, %v352
    %v525 = vpack.c.b16 %v361, %v357
    %v526 = vpack.c.b16 %v362, %v358
    %v527 = vpack.c.b16 %v363, %v359
    %v528 = vpack.c.b16 %v364, %v360
    %v529 = vpack.c.b16 %v369, %v365
    %v530 = vpack.c.b16 %v370, %v366
    %v531 = vpack.c.b16 %v371, %v367
    %v532 = vpack.c.b16 %v372, %v368
    %v533 = vpack.c.b16 %v377, %v373
    %v534 = vpack.c.b16 %v378, %v374
    %v535 = vpack.c.b16 %v379, %v375
    %v536 = vpack.c.b16 %v380, %v376
    %v537 = vpack.c.b16 %v385, %v381
    %v538 = vpack.c.b16 %v386, %v382
    %v539 = vpack.c.b16 %v387, %v383
    %v540 = vpack.c.b16 %v388, %v384
    %v541 = vpack.c.b16 %v393, %v389
    %v542 = vpack.c.b16 %v394, %v390
    %v543 = vpack.c.b16 %v395, %v391
    %v544 = vpack.c.b16 %v396, %v392
    %v545 = vpack.c.b16 %v401, %v397
    %v546 = vpack.c.b16 %v402, %v398
    %v547 = vpack.c.b16 %v403, %v399
    %v548 = vpack.c.b16 %v404, %v400
    %v549 = vpack.c.b16 %v409, %v405
    %v550 = vpack.c.b16 %v410, %v406
    %v551 = vpack.c.b16 %v411, %v407
    %v552 = vpack.c.b16 %v412, %v408
    %v553 = vpack.c.b16 %v417, %v413
    %v554 = vpack.c.b16 %v418, %v414
    %v555 = vpack.c.b16 %v419, %v415
    %v556 = vpack.c.b16 %v420, %v416
    %v557 = vpack.c.b16 %v425, %v421
    %v558 = vpack.c.b16 %v426, %v422
    %v559 = vpack.c.b16 %v427, %v423
    %v560 = vpack.c.b16 %v428, %v424
    %v561 = vpack.c.b16 %v433, %v429
    %v562 = vpack.c.b16 %v434, %v430
    %v563 = vpack.c.b16 %v435, %v431
    %v564 = vpack.c.b16 %v436, %v432
    %v565 = vpack.c.b16 %v441, %v437
    %v566 = vpack.c.b16 %v442, %v438
    %v567 = vpack.c.b16 %v443, %v439
    %v568 = vpack.c.b16 %v444, %v440
    %v569 = vpack.c.b16 %v449, %v445
    %v570 = vpack.c.b16 %v450, %v446
    %v571 = vpack.c.b16 %v451, %v447
    %v572 = vpack.c.b16 %v452, %v448
    %v573 = vpack.c.b16 %v457, %v453
    %v574 = vpack.c.b16 %v458, %v454
    %v575 = vpack.c.b16 %v459, %v455
    %v576 = vpack.c.b16 %v460, %v456
    %v577 = vpack.c.b16 %v465, %v461
    %v578 = vpack.c.b16 %v466, %v462
    %v579 = vpack.c.b16 %v467, %v463
    %v580 = vpack.c.b16 %v468, %v464
    %v581 = vpack.c.b16 %v473, %v469
    %v582 = vpack.c.b16 %v474, %v470
    %v583 = vpack.c.b16 %v475, %v471
    %v584 = vpack.c.b16 %v476, %v472
    %v585 = vpack.c.b16 %v481, %v477
    %v586 = vpack.c.b16 %v482, %v478
    %v587 = vpack.c.b16 %v483, %v479
    %v588 = vpack.c.b16 %v484, %v480
    %v589 = vpack.c.b16 %v489, %v485
    %v590 = vpack.c.b16 %v490, %v486
    %v591 = vpack.c.b16 %v491, %v487
    %v592 = vpack.c.b16 %v492, %v488
    %v593 = vpack.c.b16 %v497, %v493
    %v594 = vpack.c.b16 %v498, %v494
    %v595 = vpack.c.b16 %v499, %v495
    %v596 = vpack.c.b16 %v500, %v496
    %693 = vmatprep.subr.bf16.mxu0 %v502
    %694 = vmatpush1.bf16.msra.mxu0 %v501
    %695 = vmatprep.subr.bf16.mxu0 %v506
    %696 = vmatpush1.bf16.msra.mxu0 %v505
    %697 = vmatprep.subr.bf16.mxu0 %v510
    %698 = vmatpush1.bf16.msra.mxu0 %v509
    %699 = vmatprep.subr.bf16.mxu0 %v514
    %700 = vmatpush1.bf16.msra.mxu0 %v513
    %701 = vmatprep.subr.bf16.mxu0 %v518
    %702 = vmatpush1.bf16.msra.mxu0 %v517
    %703 = vmatprep.subr.bf16.mxu0 %v522
    %704 = vmatpush1.bf16.msra.mxu0 %v521
    %705 = vmatprep.subr.bf16.mxu0 %v526
    %706 = vmatpush1.bf16.msra.mxu0 %v525
    %707 = vmatprep.subr.bf16.mxu0 %v530
    %708 = vmatpush1.bf16.msra.mxu0 %v529
    %709 = vmatprep.subr.bf16.mxu0 %v534
    %710 = vmatpush1.bf16.msra.mxu0 %v533
    %711 = vmatprep.subr.bf16.mxu0 %v538
    %712 = vmatpush1.bf16.msra.mxu0 %v537
    %713 = vmatprep.subr.bf16.mxu0 %v542
    %714 = vmatpush1.bf16.msra.mxu0 %v541
    %715 = vmatprep.subr.bf16.mxu0 %v546
    %716 = vmatpush1.bf16.msra.mxu0 %v545
    %717 = vmatprep.subr.bf16.mxu0 %v550
    %718 = vmatpush1.bf16.msra.mxu0 %v549
    %719 = vmatprep.subr.bf16.mxu0 %v554
    %720 = vmatpush1.bf16.msra.mxu0 %v553
    %721 = vmatprep.subr.bf16.mxu0 %v558
    %722 = vmatpush1.bf16.msra.mxu0 %v557
    %723 = vmatprep.subr.bf16.mxu0 %v562
    %724 = vmatpush1.bf16.msra.mxu0 %v561
    %725 = vmatprep.mubr.bf16.mxu0 %v208
    %726 = vmatmul.mubr.bf16.gmra.mrb[0].mxu0 %v207
    %v727 = vpop.f32.mrb[0].mxu0
    %v728 = vadd.f32 %v180, %v727
    %v729 = vpop.f32.mrb[0].mxu0
    %v730 = vadd.f32 %v184, %v729
    %v731 = vpop.f32.mrb[0].mxu0
    %v732 = vadd.f32 %v180, %v731
    %v733 = vpop.f32.mrb[0].mxu0
    %v734 = vadd.f32 %v184, %v733
    %735 = vdwg.mxu0
    %736 = vmatprep.subr.bf16.mxu0 %v566
    %737 = vmatpush1.bf16.msra.mxu0 %v565
    %738 = vmatprep.subr.bf16.mxu0 %v570
    %739 = vmatpush1.bf16.msra.mxu0 %v569
    %740 = vmatprep.subr.bf16.mxu0 %v574
    %741 = vmatpush1.bf16.msra.mxu0 %v573
    %742 = vmatprep.subr.bf16.mxu0 %v578
    %743 = vmatpush1.bf16.msra.mxu0 %v577
    %744 = vmatprep.subr.bf16.mxu0 %v582
    %745 = vmatpush1.bf16.msra.mxu0 %v581
    %746 = vmatprep.subr.bf16.mxu0 %v586
    %747 = vmatpush1.bf16.msra.mxu0 %v585
    %748 = vmatprep.subr.bf16.mxu0 %v590
    %749 = vmatpush1.bf16.msra.mxu0 %v589
    %750 = vmatprep.subr.bf16.mxu0 %v594
    %751 = vmatpush1.bf16.msra.mxu0 %v593
    %752 = vmatprep.subr.bf16.mxu0 0
    %753 = vmatpush1.bf16.msra.mxu0 0
    %754 = vmatprep.subr.bf16.mxu0 0
    %755 = vmatpush1.bf16.msra.mxu0 0
    %756 = vmatprep.subr.bf16.mxu0 0
    %757 = vmatpush1.bf16.msra.mxu0 0
    %758 = vmatprep.subr.bf16.mxu0 0
    %759 = vmatpush1.bf16.msra.mxu0 0
    %760 = vmatprep.subr.bf16.mxu0 0
    %761 = vmatpush1.bf16.msra.mxu0 0
    %762 = vmatprep.subr.bf16.mxu0 0
    %763 = vmatpush1.bf16.msra.mxu0 0
    %764 = vmatprep.subr.bf16.mxu0 0
    %765 = vmatpush1.bf16.msra.mxu0 0
    %766 = vmatprep.subr.bf16.mxu0 0
    %767 = vmatpush1.bf16.msra.mxu0 0
    %768 = vmatprep.mubr.bf16.mxu0 0
    %769 = vmatmul.mubr.bf16.gmra.mrb[0].mxu0 %v209
    %v770 = vpop.f32.mrb[0].mxu0
    %v771 = vadd.f32 %v728, %v770
    %v772 = vpop.f32.mrb[0].mxu0
    %v773 = vadd.f32 %v730, %v772
    %v774 = vpop.f32.mrb[0].mxu0
    %v775 = vadd.f32 %v732, %v774
    %v776 = vpop.f32.mrb[0].mxu0
    %v777 = vadd.f32 %v734, %v776
    %778 = vdwg.mxu0
    %779 = vmatprep.subr.bf16.mxu0 %v504
    %780 = vmatpush1.bf16.msra.mxu0 %v503
    %781 = vmatprep.subr.bf16.mxu0 %v508
    %782 = vmatpush1.bf16.msra.mxu0 %v507
    %783 = vmatprep.subr.bf16.mxu0 %v512
    %784 = vmatpush1.bf16.msra.mxu0 %v511
    %785 = vmatprep.subr.bf16.mxu0 %v516
    %786 = vmatpush1.bf16.msra.mxu0 %v515
    %787 = vmatprep.subr.bf16.mxu0 %v520
    %788 = vmatpush1.bf16.msra.mxu0 %v519
    %789 = vmatprep.subr.bf16.mxu0 %v524
    %790 = vmatpush1.bf16.msra.mxu0 %v523
    %791 = vmatprep.subr.bf16.mxu0 %v528
    %792 = vmatpush1.bf16.msra.mxu0 %v527
    %793 = vmatprep.subr.bf16.mxu0 %v532
    %794 = vmatpush1.bf16.msra.mxu0 %v531
    %795 = vmatprep.subr.bf16.mxu0 %v536
    %796 = vmatpush1.bf16.msra.mxu0 %v535
    %797 = vmatprep.subr.bf16.mxu0 %v540
    %798 = vmatpush1.bf16.msra.mxu0 %v539
    %799 = vmatprep.subr.bf16.mxu0 %v544
    %800 = vmatpush1.bf16.msra.mxu0 %v543
    %801 = vmatprep.subr.bf16.mxu0 %v548
    %802 = vmatpush1.bf16.msra.mxu0 %v547
    %803 = vmatprep.subr.bf16.mxu0 %v552
    %804 = vmatpush1.bf16.msra.mxu0 %v551
    %805 = vmatprep.subr.bf16.mxu0 %v556
    %806 = vmatpush1.bf16.msra.mxu0 %v555
    %807 = vmatprep.subr.bf16.mxu0 %v560
    %808 = vmatpush1.bf16.msra.mxu0 %v559
    %809 = vmatprep.subr.bf16.mxu0 %v564
    %810 = vmatpush1.bf16.msra.mxu0 %v563
    %811 = vmatprep.mubr.bf16.mxu0 %v208
    %812 = vmatmul.mubr.bf16.gmra.mrb[0].mxu0 %v207
    %v813 = vpop.f32.mrb[0].mxu0
    %v814 = vadd.f32 %v188, %v813
    %v815 = vpop.f32.mrb[0].mxu0
    %v816 = vadd.f32 %v192, %v815
    %v817 = vpop.f32.mrb[0].mxu0
    %v818 = vadd.f32 %v188, %v817
    %v819 = vpop.f32.mrb[0].mxu0
    %v820 = vadd.f32 %v192, %v819
    %821 = vdwg.mxu0
    %822 = vmatprep.subr.bf16.mxu0 %v568
    %823 = vmatpush1.bf16.msra.mxu0 %v567
    %824 = vmatprep.subr.bf16.mxu0 %v572
    %825 = vmatpush1.bf16.msra.mxu0 %v571
    %826 = vmatprep.subr.bf16.mxu0 %v576
    %827 = vmatpush1.bf16.msra.mxu0 %v575
    %828 = vmatprep.subr.bf16.mxu0 %v580
    %829 = vmatpush1.bf16.msra.mxu0 %v579
    %830 = vmatprep.subr.bf16.mxu0 %v584
    %831 = vmatpush1.bf16.msra.mxu0 %v583
    %832 = vmatprep.subr.bf16.mxu0 %v588
    %833 = vmatpush1.bf16.msra.mxu0 %v587
    %834 = vmatprep.subr.bf16.mxu0 %v592
    %835 = vmatpush1.bf16.msra.mxu0 %v591
    %836 = vmatprep.subr.bf16.mxu0 %v596
    %837 = vmatpush1.bf16.msra.mxu0 %v595
    %838 = vmatprep.subr.bf16.mxu0 0
    %839 = vmatpush1.bf16.msra.mxu0 0
    %840 = vmatprep.subr.bf16.mxu0 0
    %841 = vmatpush1.bf16.msra.mxu0 0
    %842 = vmatprep.subr.bf16.mxu0 0
    %843 = vmatpush1.bf16.msra.mxu0 0
    %844 = vmatprep.subr.bf16.mxu0 0
    %845 = vmatpush1.bf16.msra.mxu0 0
    %846 = vmatprep.subr.bf16.mxu0 0
    %847 = vmatpush1.bf16.msra.mxu0 0
    %848 = vmatprep.subr.bf16.mxu0 0
    %849 = vmatpush1.bf16.msra.mxu0 0
    %850 = vmatprep.subr.bf16.mxu0 0
    %851 = vmatpush1.bf16.msra.mxu0 0
    %852 = vmatprep.subr.bf16.mxu0 0
    %853 = vmatpush1.bf16.msra.mxu0 0
    %854 = vmatprep.mubr.bf16.mxu0 0
    %855 = vmatmul.mubr.bf16.gmra.mrb[0].mxu0 %v209
    %v856 = vpop.f32.mrb[0].mxu0
    %v857 = vadd.f32 %v814, %v856
    %v858 = vpop.f32.mrb[0].mxu0
    %v859 = vadd.f32 %v816, %v858
    %v860 = vpop.f32.mrb[0].mxu0
    %v861 = vadd.f32 %v818, %v860
    %v862 = vpop.f32.mrb[0].mxu0
    %v863 = vadd.f32 %v820, %v862
    %864 = vdwg.mxu0
    %v865 = vadd.f32 %v771, %v773
    %v866 = vadd.f32 %v865, %v857
    %v867 = vadd.f32 %v866, %v859
    %868 = vadd.xlane.f32.xlu0 %v867
    %v869 = vpop.xlane.xlu0 %868
    %v870 = vadd.f32 %v775, %v777
    %v871 = vadd.f32 %v870, %v861
    %v872 = vadd.f32 %v871, %v863
    %873 = vadd.xlane.f32.xlu0 %v872
    %v874 = vpop.xlane.xlu0 %873
    %v875 = vrcp.pop 512.0
    %v876 = vmul.f32 %v869, %v875
    %v877 = vmul.f32 %v874, %v875
    %v878 = vsub.f32 %v771, %v876
    %v879 = vsub.f32 %v773, %v876
    %v880 = vsub.f32 %v857, %v876
    %v881 = vsub.f32 %v859, %v876
    %v882 = vsub.f32 %v775, %v877
    %v883 = vsub.f32 %v777, %v877
    %v884 = vsub.f32 %v861, %v877
    %v885 = vsub.f32 %v863, %v877
    %v886 = vmul.f32 %v878, %v878
    %v887 = vmul.f32 %v879, %v879
    %v888 = vmul.f32 %v880, %v880
    %v889 = vmul.f32 %v881, %v881
    %v890 = vmul.f32 %v882, %v882
    %v891 = vmul.f32 %v883, %v883
    %v892 = vmul.f32 %v884, %v884
    %v893 = vmul.f32 %v885, %v885
    %v894 = vadd.f32 %v886, %v887
    %v895 = vadd.f32 %v894, %v888
    %v896 = vadd.f32 %v895, %v889
    %897 = vadd.xlane.f32.xlu0 %v896
    %v898 = vpop.xlane.xlu0 %897
    %v899 = vadd.f32 %v890, %v891
    %v900 = vadd.f32 %v899, %v892
    %v901 = vadd.f32 %v900, %v893
    %902 = vadd.xlane.f32.xlu0 %v901
    %v903 = vpop.xlane.xlu0 %902
    %v904 = vmul.f32 %v898, %v875
    %v905 = vmul.f32 %v903, %v875
    %v906 = vadd.f32 %v904, 1e-05
    %v907 = vadd.f32 %v905, 1e-05
    %v908 = vrsqrt.pop %v906
    %v909 = vrsqrt.pop %v907
    %v910 = vmul.f32 %v878, %v908
    %v911 = vmul.f32 %v879, %v908
    %v912 = vmul.f32 %v880, %v908
    %v913 = vmul.f32 %v881, %v908
    %v914 = vmul.f32 %v882, %v909
    %v915 = vmul.f32 %v883, %v909
    %v916 = vmul.f32 %v884, %v909
    %v917 = vmul.f32 %v885, %v909
    %v919 = vlaneseq
    %v920 = vshrl.u32 %v919, 7
    %v921 = vsub.s32 0, %v920
    %v922 = vrot.slane %v69, %v921
    %v923 = vlaneseq
    %v924 = vshrl.u32 %v923, 7
    %v925 = vsub.s32 1, %v924
    %v926 = vrot.slane %v69, %v925
    %v927 = vlaneseq
    %v928 = vshrl.u32 %v927, 7
    %v929 = vsub.s32 2, %v928
    %v930 = vrot.slane %v69, %v929
    %v931 = vlaneseq
    %v932 = vshrl.u32 %v931, 7
    %v933 = vsub.s32 3, %v932
    %v934 = vrot.slane %v69, %v933
    %v939 = vmul.f32 %v910, %v922
    %v940 = vmul.f32 %v911, %v926
    %v941 = vmul.f32 %v912, %v930
    %v942 = vmul.f32 %v913, %v934
    %v943 = vmul.f32 %v914, %v922
    %v944 = vmul.f32 %v915, %v926
    %v945 = vmul.f32 %v916, %v930
    %v946 = vmul.f32 %v917, %v934
    %v948 = vlaneseq
    %v949 = vshrl.u32 %v948, 7
    %v950 = vsub.s32 0, %v949
    %v951 = vrot.slane %v71, %v950
    %v952 = vlaneseq
    %v953 = vshrl.u32 %v952, 7
    %v954 = vsub.s32 1, %v953
    %v955 = vrot.slane %v71, %v954
    %v956 = vlaneseq
    %v957 = vshrl.u32 %v956, 7
    %v958 = vsub.s32 2, %v957
    %v959 = vrot.slane %v71, %v958
    %v960 = vlaneseq
    %v961 = vshrl.u32 %v960, 7
    %v962 = vsub.s32 3, %v961
    %v963 = vrot.slane %v71, %v962
    %v968 = vadd.f32 %v939, %v951
    %v969 = vadd.f32 %v940, %v955
    %v970 = vadd.f32 %v941, %v959
    %v971 = vadd.f32 %v942, %v963
    %v972 = vadd.f32 %v943, %v951
    %v973 = vadd.f32 %v944, %v955
    %v974 = vadd.f32 %v945, %v959
    %v975 = vadd.f32 %v946, %v963
    %v976 = vmax.f32 %v968, 0.0
    %v977 = vmax.f32 %v969, 0.0
    %v978 = vmax.f32 %v970, 0.0
    %v979 = vmax.f32 %v971, 0.0
    %v980 = vmax.f32 %v972, 0.0
    %v981 = vmax.f32 %v973, 0.0
    %v982 = vmax.f32 %v974, 0.0
    %v983 = vmax.f32 %v975, 0.0
    %v984 = vpack.c.bf16 %v980, %v976
    %v985 = vpack.c.bf16 %v981, %v977
    %v986 = vpack.c.bf16 %v982, %v978
    %v987 = vpack.c.bf16 %v983, %v979
    %v988 = vld [vmem:[#allocation5] sm:$0xff]
    %v989 = vld [vmem:[#allocation5 + $0x8] sm:$0xff]
    %v990 = vld [vmem:[#allocation5 + $0x10] sm:$0xff]
    %v991 = vld [vmem:[#allocation5 + $0x18] sm:$0xff]
    %v992 = vld [vmem:[#allocation5 + $0x20] sm:$0xff]
    %v993 = vld [vmem:[#allocation5 + $0x28] sm:$0xff]
    %v994 = vld [vmem:[#allocation5 + $0x30] sm:$0xff]
    %v995 = vld [vmem:[#allocation5 + $0x38] sm:$0xff]
    %v996 = vld [vmem:[#allocation5 + $0x40] sm:$0xff]
    %v997 = vld [vmem:[#allocation5 + $0x48] sm:$0xff]
    %v998 = vld [vmem:[#allocation5 + $0x50] sm:$0xff]
    %v999 = vld [vmem:[#allocation5 + $0x58] sm:$0xff]
    %v1000 = vld [vmem:[#allocation5 + $0x60] sm:$0xff]
    %v1001 = vld [vmem:[#allocation5 + $0x68] sm:$0xff]
    %v1002 = vld [vmem:[#allocation5 + $0x70] sm:$0xff]
    %v1003 = vld [vmem:[#allocation5 + $0x78] sm:$0xff]
    %v1004 = vld [vmem:[#allocation5 + $0x80] sm:$0xff]
    %v1005 = vld [vmem:[#allocation5 + $0x88] sm:$0xff]
    %v1006 = vld [vmem:[#allocation5 + $0x90] sm:$0xff]
    %v1007 = vld [vmem:[#allocation5 + $0x98] sm:$0xff]
    %v1008 = vld [vmem:[#allocation5 + $0xa0] sm:$0xff]
    %v1009 = vld [vmem:[#allocation5 + $0xa8] sm:$0xff]
    %v1010 = vld [vmem:[#allocation5 + $0xb0] sm:$0xff]
    %v1011 = vld [vmem:[#allocation5 + $0xb8] sm:$0xff]
    %v1012 = vld [vmem:[#allocation5 + $0xc0] sm:$0xff]
    %v1013 = vld [vmem:[#allocation5 + $0xc8] sm:$0xff]
    %v1014 = vld [vmem:[#allocation5 + $0xd0] sm:$0xff]
    %v1015 = vld [vmem:[#allocation5 + $0xd8] sm:$0xff]
    %v1016 = vld [vmem:[#allocation5 + $0xe0] sm:$0xff]
    %v1017 = vld [vmem:[#allocation5 + $0xe8] sm:$0xff]
    %v1018 = vld [vmem:[#allocation5 + $0xf0] sm:$0xff]
    %v1019 = vld [vmem:[#allocation5 + $0xf8] sm:$0xff]
    %v1020 = vld [vmem:[#allocation5 + $0x100] sm:$0xff]
    %v1021 = vld [vmem:[#allocation5 + $0x108] sm:$0xff]
    %v1022 = vld [vmem:[#allocation5 + $0x110] sm:$0xff]
    %v1023 = vld [vmem:[#allocation5 + $0x118] sm:$0xff]
    %v1024 = vld [vmem:[#allocation5 + $0x120] sm:$0xff]
    %v1025 = vld [vmem:[#allocation5 + $0x128] sm:$0xff]
    %v1026 = vld [vmem:[#allocation5 + $0x130] sm:$0xff]
    %v1027 = vld [vmem:[#allocation5 + $0x138] sm:$0xff]
    %v1028 = vld [vmem:[#allocation5 + $0x140] sm:$0xff]
    %v1029 = vld [vmem:[#allocation5 + $0x148] sm:$0xff]
    %v1030 = vld [vmem:[#allocation5 + $0x150] sm:$0xff]
    %v1031 = vld [vmem:[#allocation5 + $0x158] sm:$0xff]
    %v1032 = vld [vmem:[#allocation5 + $0x160] sm:$0xff]
    %v1033 = vld [vmem:[#allocation5 + $0x168] sm:$0xff]
    %v1034 = vld [vmem:[#allocation5 + $0x170] sm:$0xff]
    %v1035 = vld [vmem:[#allocation5 + $0x178] sm:$0xff]
    %v1036 = vld [vmem:[#allocation5 + $0x180] sm:$0xff]
    %v1037 = vld [vmem:[#allocation5 + $0x188] sm:$0xff]
    %v1038 = vld [vmem:[#allocation5 + $0x190] sm:$0xff]
    %v1039 = vld [vmem:[#allocation5 + $0x198] sm:$0xff]
    %v1040 = vld [vmem:[#allocation5 + $0x1a0] sm:$0xff]
    %v1041 = vld [vmem:[#allocation5 + $0x1a8] sm:$0xff]
    %v1042 = vld [vmem:[#allocation5 + $0x1b0] sm:$0xff]
    %v1043 = vld [vmem:[#allocation5 + $0x1b8] sm:$0xff]
    %v1044 = vld [vmem:[#allocation5 + $0x1c0] sm:$0xff]
    %v1045 = vld [vmem:[#allocation5 + $0x1c8] sm:$0xff]
    %v1046 = vld [vmem:[#allocation5 + $0x1d0] sm:$0xff]
    %v1047 = vld [vmem:[#allocation5 + $0x1d8] sm:$0xff]
    %v1048 = vld [vmem:[#allocation5 + $0x1e0] sm:$0xff]
    %v1049 = vld [vmem:[#allocation5 + $0x1e8] sm:$0xff]
    %v1050 = vld [vmem:[#allocation5 + $0x1f0] sm:$0xff]
    %v1051 = vld [vmem:[#allocation5 + $0x1f8] sm:$0xff]
    %v1052 = vld [vmem:[#allocation5 + $0x200] sm:$0xff]
    %v1053 = vld [vmem:[#allocation5 + $0x208] sm:$0xff]
    %v1054 = vld [vmem:[#allocation5 + $0x210] sm:$0xff]
    %v1055 = vld [vmem:[#allocation5 + $0x218] sm:$0xff]
    %v1056 = vld [vmem:[#allocation5 + $0x220] sm:$0xff]
    %v1057 = vld [vmem:[#allocation5 + $0x228] sm:$0xff]
    %v1058 = vld [vmem:[#allocation5 + $0x230] sm:$0xff]
    %v1059 = vld [vmem:[#allocation5 + $0x238] sm:$0xff]
    %v1060 = vld [vmem:[#allocation5 + $0x240] sm:$0xff]
    %v1061 = vld [vmem:[#allocation5 + $0x248] sm:$0xff]
    %v1062 = vld [vmem:[#allocation5 + $0x250] sm:$0xff]
    %v1063 = vld [vmem:[#allocation5 + $0x258] sm:$0xff]
    %v1064 = vld [vmem:[#allocation5 + $0x260] sm:$0xff]
    %v1065 = vld [vmem:[#allocation5 + $0x268] sm:$0xff]
    %v1066 = vld [vmem:[#allocation5 + $0x270] sm:$0xff]
    %v1067 = vld [vmem:[#allocation5 + $0x278] sm:$0xff]
    %v1068 = vld [vmem:[#allocation5 + $0x280] sm:$0xff]
    %v1069 = vld [vmem:[#allocation5 + $0x288] sm:$0xff]
    %v1070 = vld [vmem:[#allocation5 + $0x290] sm:$0xff]
    %v1071 = vld [vmem:[#allocation5 + $0x298] sm:$0xff]
    %v1072 = vld [vmem:[#allocation5 + $0x2a0] sm:$0xff]
    %v1073 = vld [vmem:[#allocation5 + $0x2a8] sm:$0xff]
    %v1074 = vld [vmem:[#allocation5 + $0x2b0] sm:$0xff]
    %v1075 = vld [vmem:[#allocation5 + $0x2b8] sm:$0xff]
    %v1076 = vld [vmem:[#allocation5 + $0x2c0] sm:$0xff]
    %v1077 = vld [vmem:[#allocation5 + $0x2c8] sm:$0xff]
    %v1078 = vld [vmem:[#allocation5 + $0x2d0] sm:$0xff]
    %v1079 = vld [vmem:[#allocation5 + $0x2d8] sm:$0xff]
    %v1080 = vld [vmem:[#allocation5 + $0x2e0] sm:$0xff]
    %v1081 = vld [vmem:[#allocation5 + $0x2e8] sm:$0xff]
    %v1082 = vld [vmem:[#allocation5 + $0x2f0] sm:$0xff]
    %v1083 = vld [vmem:[#allocation5 + $0x2f8] sm:$0xff]
    %v1084 = vld [vmem:[#allocation5 + $0x300] sm:$0xff]
    %v1085 = vld [vmem:[#allocation5 + $0x308] sm:$0xff]
    %v1086 = vld [vmem:[#allocation5 + $0x310] sm:$0xff]
    %v1087 = vld [vmem:[#allocation5 + $0x318] sm:$0xff]
    %v1088 = vld [vmem:[#allocation5 + $0x320] sm:$0xff]
    %v1089 = vld [vmem:[#allocation5 + $0x328] sm:$0xff]
    %v1090 = vld [vmem:[#allocation5 + $0x330] sm:$0xff]
    %v1091 = vld [vmem:[#allocation5 + $0x338] sm:$0xff]
    %v1092 = vld [vmem:[#allocation5 + $0x340] sm:$0xff]
    %v1093 = vld [vmem:[#allocation5 + $0x348] sm:$0xff]
    %v1094 = vld [vmem:[#allocation5 + $0x350] sm:$0xff]
    %v1095 = vld [vmem:[#allocation5 + $0x358] sm:$0xff]
    %v1096 = vld [vmem:[#allocation5 + $0x360] sm:$0xff]
    %v1097 = vld [vmem:[#allocation5 + $0x368] sm:$0xff]
    %v1098 = vld [vmem:[#allocation5 + $0x370] sm:$0xff]
    %v1099 = vld [vmem:[#allocation5 + $0x378] sm:$0xff]
    %v1100 = vld [vmem:[#allocation5 + $0x380] sm:$0xff]
    %v1101 = vld [vmem:[#allocation5 + $0x388] sm:$0xff]
    %v1102 = vld [vmem:[#allocation5 + $0x390] sm:$0xff]
    %v1103 = vld [vmem:[#allocation5 + $0x398] sm:$0xff]
    %v1104 = vld [vmem:[#allocation5 + $0x3a0] sm:$0xff]
    %v1105 = vld [vmem:[#allocation5 + $0x3a8] sm:$0xff]
    %v1106 = vld [vmem:[#allocation5 + $0x3b0] sm:$0xff]
    %v1107 = vld [vmem:[#allocation5 + $0x3b8] sm:$0xff]
    %v1108 = vld [vmem:[#allocation5 + $0x3c0] sm:$0xff]
    %v1109 = vld [vmem:[#allocation5 + $0x3c8] sm:$0xff]
    %v1110 = vld [vmem:[#allocation5 + $0x3d0] sm:$0xff]
    %v1111 = vld [vmem:[#allocation5 + $0x3d8] sm:$0xff]
    %v1112 = vld [vmem:[#allocation5 + $0x3e0] sm:$0xff]
    %v1113 = vld [vmem:[#allocation5 + $0x3e8] sm:$0xff]
    %v1114 = vld [vmem:[#allocation5 + $0x3f0] sm:$0xff]
    %v1115 = vld [vmem:[#allocation5 + $0x3f8] sm:$0xff]
    %v1117 = vlaneseq
    %v1118 = vshrl.u32 %v1117, 7
    %v1119 = vsub.s32 0, %v1118
    %v1120 = vrot.slane %v73, %v1119
    %v1121 = vlaneseq
    %v1122 = vshrl.u32 %v1121, 7
    %v1123 = vsub.s32 1, %v1122
    %v1124 = vrot.slane %v73, %v1123
    %v1125 = vlaneseq
    %v1126 = vshrl.u32 %v1125, 7
    %v1127 = vsub.s32 2, %v1126
    %v1128 = vrot.slane %v73, %v1127
    %v1129 = vlaneseq
    %v1130 = vshrl.u32 %v1129, 7
    %v1131 = vsub.s32 3, %v1130
    %v1132 = vrot.slane %v73, %v1131
    %v1265 = vunpack.c.l.b16 %v988
    %v1266 = vunpack.c.h.b16 %v988
    %v1267 = vunpack.c.l.b16 %v989
    %v1268 = vunpack.c.h.b16 %v989
    %v1269 = vunpack.c.l.b16 %v990
    %v1270 = vunpack.c.h.b16 %v990
    %v1271 = vunpack.c.l.b16 %v991
    %v1272 = vunpack.c.h.b16 %v991
    %v1273 = vunpack.c.l.b16 %v992
    %v1274 = vunpack.c.h.b16 %v992
    %v1275 = vunpack.c.l.b16 %v993
    %v1276 = vunpack.c.h.b16 %v993
    %v1277 = vunpack.c.l.b16 %v994
    %v1278 = vunpack.c.h.b16 %v994
    %v1279 = vunpack.c.l.b16 %v995
    %v1280 = vunpack.c.h.b16 %v995
    %v1281 = vunpack.c.l.b16 %v996
    %v1282 = vunpack.c.h.b16 %v996
    %v1283 = vunpack.c.l.b16 %v997
    %v1284 = vunpack.c.h.b16 %v997
    %v1285 = vunpack.c.l.b16 %v998
    %v1286 = vunpack.c.h.b16 %v998
    %v1287 = vunpack.c.l.b16 %v999
    %v1288 = vunpack.c.h.b16 %v999
    %v1289 = vunpack.c.l.b16 %v1000
    %v1290 = vunpack.c.h.b16 %v1000
    %v1291 = vunpack.c.l.b16 %v1001
    %v1292 = vunpack.c.h.b16 %v1001
    %v1293 = vunpack.c.l.b16 %v1002
    %v1294 = vunpack.c.h.b16 %v1002
    %v1295 = vunpack.c.l.b16 %v1003
    %v1296 = vunpack.c.h.b16 %v1003
    %v1297 = vunpack.c.l.b16 %v1004
    %v1298 = vunpack.c.h.b16 %v1004
    %v1299 = vunpack.c.l.b16 %v1005
    %v1300 = vunpack.c.h.b16 %v1005
    %v1301 = vunpack.c.l.b16 %v1006
    %v1302 = vunpack.c.h.b16 %v1006
    %v1303 = vunpack.c.l.b16 %v1007
    %v1304 = vunpack.c.h.b16 %v1007
    %v1305 = vunpack.c.l.b16 %v1008
    %v1306 = vunpack.c.h.b16 %v1008
    %v1307 = vunpack.c.l.b16 %v1009
    %v1308 = vunpack.c.h.b16 %v1009
    %v1309 = vunpack.c.l.b16 %v1010
    %v1310 = vunpack.c.h.b16 %v1010
    %v1311 = vunpack.c.l.b16 %v1011
    %v1312 = vunpack.c.h.b16 %v1011
    %v1313 = vunpack.c.l.b16 %v1012
    %v1314 = vunpack.c.h.b16 %v1012
    %v1315 = vunpack.c.l.b16 %v1013
    %v1316 = vunpack.c.h.b16 %v1013
    %v1317 = vunpack.c.l.b16 %v1014
    %v1318 = vunpack.c.h.b16 %v1014
    %v1319 = vunpack.c.l.b16 %v1015
    %v1320 = vunpack.c.h.b16 %v1015
    %v1321 = vunpack.c.l.b16 %v1016
    %v1322 = vunpack.c.h.b16 %v1016
    %v1323 = vunpack.c.l.b16 %v1017
    %v1324 = vunpack.c.h.b16 %v1017
    %v1325 = vunpack.c.l.b16 %v1018
    %v1326 = vunpack.c.h.b16 %v1018
    %v1327 = vunpack.c.l.b16 %v1019
    %v1328 = vunpack.c.h.b16 %v1019
    %v1329 = vunpack.c.l.b16 %v1020
    %v1330 = vunpack.c.h.b16 %v1020
    %v1331 = vunpack.c.l.b16 %v1021
    %v1332 = vunpack.c.h.b16 %v1021
    %v1333 = vunpack.c.l.b16 %v1022
    %v1334 = vunpack.c.h.b16 %v1022
    %v1335 = vunpack.c.l.b16 %v1023
    %v1336 = vunpack.c.h.b16 %v1023
    %v1337 = vunpack.c.l.b16 %v1024
    %v1338 = vunpack.c.h.b16 %v1024
    %v1339 = vunpack.c.l.b16 %v1025
    %v1340 = vunpack.c.h.b16 %v1025
    %v1341 = vunpack.c.l.b16 %v1026
    %v1342 = vunpack.c.h.b16 %v1026
    %v1343 = vunpack.c.l.b16 %v1027
    %v1344 = vunpack.c.h.b16 %v1027
    %v1345 = vunpack.c.l.b16 %v1028
    %v1346 = vunpack.c.h.b16 %v1028
    %v1347 = vunpack.c.l.b16 %v1029
    %v1348 = vunpack.c.h.b16 %v1029
    %v1349 = vunpack.c.l.b16 %v1030
    %v1350 = vunpack.c.h.b16 %v1030
    %v1351 = vunpack.c.l.b16 %v1031
    %v1352 = vunpack.c.h.b16 %v1031
    %v1353 = vunpack.c.l.b16 %v1032
    %v1354 = vunpack.c.h.b16 %v1032
    %v1355 = vunpack.c.l.b16 %v1033
    %v1356 = vunpack.c.h.b16 %v1033
    %v1357 = vunpack.c.l.b16 %v1034
    %v1358 = vunpack.c.h.b16 %v1034
    %v1359 = vunpack.c.l.b16 %v1035
    %v1360 = vunpack.c.h.b16 %v1035
    %v1361 = vunpack.c.l.b16 %v1036
    %v1362 = vunpack.c.h.b16 %v1036
    %v1363 = vunpack.c.l.b16 %v1037
    %v1364 = vunpack.c.h.b16 %v1037
    %v1365 = vunpack.c.l.b16 %v1038
    %v1366 = vunpack.c.h.b16 %v1038
    %v1367 = vunpack.c.l.b16 %v1039
    %v1368 = vunpack.c.h.b16 %v1039
    %v1369 = vunpack.c.l.b16 %v1040
    %v1370 = vunpack.c.h.b16 %v1040
    %v1371 = vunpack.c.l.b16 %v1041
    %v1372 = vunpack.c.h.b16 %v1041
    %v1373 = vunpack.c.l.b16 %v1042
    %v1374 = vunpack.c.h.b16 %v1042
    %v1375 = vunpack.c.l.b16 %v1043
    %v1376 = vunpack.c.h.b16 %v1043
    %v1377 = vunpack.c.l.b16 %v1044
    %v1378 = vunpack.c.h.b16 %v1044
    %v1379 = vunpack.c.l.b16 %v1045
    %v1380 = vunpack.c.h.b16 %v1045
    %v1381 = vunpack.c.l.b16 %v1046
    %v1382 = vunpack.c.h.b16 %v1046
    %v1383 = vunpack.c.l.b16 %v1047
    %v1384 = vunpack.c.h.b16 %v1047
    %v1385 = vunpack.c.l.b16 %v1048
    %v1386 = vunpack.c.h.b16 %v1048
    %v1387 = vunpack.c.l.b16 %v1049
    %v1388 = vunpack.c.h.b16 %v1049
    %v1389 = vunpack.c.l.b16 %v1050
    %v1390 = vunpack.c.h.b16 %v1050
    %v1391 = vunpack.c.l.b16 %v1051
    %v1392 = vunpack.c.h.b16 %v1051
    %v1393 = vunpack.c.l.b16 %v1052
    %v1394 = vunpack.c.h.b16 %v1052
    %v1395 = vunpack.c.l.b16 %v1053
    %v1396 = vunpack.c.h.b16 %v1053
    %v1397 = vunpack.c.l.b16 %v1054
    %v1398 = vunpack.c.h.b16 %v1054
    %v1399 = vunpack.c.l.b16 %v1055
    %v1400 = vunpack.c.h.b16 %v1055
    %v1401 = vunpack.c.l.b16 %v1056
    %v1402 = vunpack.c.h.b16 %v1056
    %v1403 = vunpack.c.l.b16 %v1057
    %v1404 = vunpack.c.h.b16 %v1057
    %v1405 = vunpack.c.l.b16 %v1058
    %v1406 = vunpack.c.h.b16 %v1058
    %v1407 = vunpack.c.l.b16 %v1059
    %v1408 = vunpack.c.h.b16 %v1059
    %v1409 = vunpack.c.l.b16 %v1060
    %v1410 = vunpack.c.h.b16 %v1060
    %v1411 = vunpack.c.l.b16 %v1061
    %v1412 = vunpack.c.h.b16 %v1061
    %v1413 = vunpack.c.l.b16 %v1062
    %v1414 = vunpack.c.h.b16 %v1062
    %v1415 = vunpack.c.l.b16 %v1063
    %v1416 = vunpack.c.h.b16 %v1063
    %v1417 = vunpack.c.l.b16 %v1064
    %v1418 = vunpack.c.h.b16 %v1064
    %v1419 = vunpack.c.l.b16 %v1065
    %v1420 = vunpack.c.h.b16 %v1065
    %v1421 = vunpack.c.l.b16 %v1066
    %v1422 = vunpack.c.h.b16 %v1066
    %v1423 = vunpack.c.l.b16 %v1067
    %v1424 = vunpack.c.h.b16 %v1067
    %v1425 = vunpack.c.l.b16 %v1068
    %v1426 = vunpack.c.h.b16 %v1068
    %v1427 = vunpack.c.l.b16 %v1069
    %v1428 = vunpack.c.h.b16 %v1069
    %v1429 = vunpack.c.l.b16 %v1070
    %v1430 = vunpack.c.h.b16 %v1070
    %v1431 = vunpack.c.l.b16 %v1071
    %v1432 = vunpack.c.h.b16 %v1071
    %v1433 = vunpack.c.l.b16 %v1072
    %v1434 = vunpack.c.h.b16 %v1072
    %v1435 = vunpack.c.l.b16 %v1073
    %v1436 = vunpack.c.h.b16 %v1073
    %v1437 = vunpack.c.l.b16 %v1074
    %v1438 = vunpack.c.h.b16 %v1074
    %v1439 = vunpack.c.l.b16 %v1075
    %v1440 = vunpack.c.h.b16 %v1075
    %v1441 = vunpack.c.l.b16 %v1076
    %v1442 = vunpack.c.h.b16 %v1076
    %v1443 = vunpack.c.l.b16 %v1077
    %v1444 = vunpack.c.h.b16 %v1077
    %v1445 = vunpack.c.l.b16 %v1078
    %v1446 = vunpack.c.h.b16 %v1078
    %v1447 = vunpack.c.l.b16 %v1079
    %v1448 = vunpack.c.h.b16 %v1079
    %v1449 = vunpack.c.l.b16 %v1080
    %v1450 = vunpack.c.h.b16 %v1080
    %v1451 = vunpack.c.l.b16 %v1081
    %v1452 = vunpack.c.h.b16 %v1081
    %v1453 = vunpack.c.l.b16 %v1082
    %v1454 = vunpack.c.h.b16 %v1082
    %v1455 = vunpack.c.l.b16 %v1083
    %v1456 = vunpack.c.h.b16 %v1083
    %v1457 = vunpack.c.l.b16 %v1084
    %v1458 = vunpack.c.h.b16 %v1084
    %v1459 = vunpack.c.l.b16 %v1085
    %v1460 = vunpack.c.h.b16 %v1085
    %v1461 = vunpack.c.l.b16 %v1086
    %v1462 = vunpack.c.h.b16 %v1086
    %v1463 = vunpack.c.l.b16 %v1087
    %v1464 = vunpack.c.h.b16 %v1087
    %v1465 = vunpack.c.l.b16 %v1088
    %v1466 = vunpack.c.h.b16 %v1088
    %v1467 = vunpack.c.l.b16 %v1089
    %v1468 = vunpack.c.h.b16 %v1089
    %v1469 = vunpack.c.l.b16 %v1090
    %v1470 = vunpack.c.h.b16 %v1090
    %v1471 = vunpack.c.l.b16 %v1091
    %v1472 = vunpack.c.h.b16 %v1091
    %v1473 = vunpack.c.l.b16 %v1092
    %v1474 = vunpack.c.h.b16 %v1092
    %v1475 = vunpack.c.l.b16 %v1093
    %v1476 = vunpack.c.h.b16 %v1093
    %v1477 = vunpack.c.l.b16 %v1094
    %v1478 = vunpack.c.h.b16 %v1094
    %v1479 = vunpack.c.l.b16 %v1095
    %v1480 = vunpack.c.h.b16 %v1095
    %v1481 = vunpack.c.l.b16 %v1096
    %v1482 = vunpack.c.h.b16 %v1096
    %v1483 = vunpack.c.l.b16 %v1097
    %v1484 = vunpack.c.h.b16 %v1097
    %v1485 = vunpack.c.l.b16 %v1098
    %v1486 = vunpack.c.h.b16 %v1098
    %v1487 = vunpack.c.l.b16 %v1099
    %v1488 = vunpack.c.h.b16 %v1099
    %v1489 = vunpack.c.l.b16 %v1100
    %v1490 = vunpack.c.h.b16 %v1100
    %v1491 = vunpack.c.l.b16 %v1101
    %v1492 = vunpack.c.h.b16 %v1101
    %v1493 = vunpack.c.l.b16 %v1102
    %v1494 = vunpack.c.h.b16 %v1102
    %v1495 = vunpack.c.l.b16 %v1103
    %v1496 = vunpack.c.h.b16 %v1103
    %v1497 = vunpack.c.l.b16 %v1104
    %v1498 = vunpack.c.h.b16 %v1104
    %v1499 = vunpack.c.l.b16 %v1105
    %v1500 = vunpack.c.h.b16 %v1105
    %v1501 = vunpack.c.l.b16 %v1106
    %v1502 = vunpack.c.h.b16 %v1106
    %v1503 = vunpack.c.l.b16 %v1107
    %v1504 = vunpack.c.h.b16 %v1107
    %v1505 = vunpack.c.l.b16 %v1108
    %v1506 = vunpack.c.h.b16 %v1108
    %v1507 = vunpack.c.l.b16 %v1109
    %v1508 = vunpack.c.h.b16 %v1109
    %v1509 = vunpack.c.l.b16 %v1110
    %v1510 = vunpack.c.h.b16 %v1110
    %v1511 = vunpack.c.l.b16 %v1111
    %v1512 = vunpack.c.h.b16 %v1111
    %v1513 = vunpack.c.l.b16 %v1112
    %v1514 = vunpack.c.h.b16 %v1112
    %v1515 = vunpack.c.l.b16 %v1113
    %v1516 = vunpack.c.h.b16 %v1113
    %v1517 = vunpack.c.l.b16 %v1114
    %v1518 = vunpack.c.h.b16 %v1114
    %v1519 = vunpack.c.l.b16 %v1115
    %v1520 = vunpack.c.h.b16 %v1115
    %v1521 = vpack.c.b16 %v1269, %v1265
    %v1522 = vpack.c.b16 %v1270, %v1266
    %v1523 = vpack.c.b16 %v1271, %v1267
    %v1524 = vpack.c.b16 %v1272, %v1268
    %v1525 = vpack.c.b16 %v1277, %v1273
    %v1526 = vpack.c.b16 %v1278, %v1274
    %v1527 = vpack.c.b16 %v1279, %v1275
    %v1528 = vpack.c.b16 %v1280, %v1276
    %v1529 = vpack.c.b16 %v1285, %v1281
    %v1530 = vpack.c.b16 %v1286, %v1282
    %v1531 = vpack.c.b16 %v1287, %v1283
    %v1532 = vpack.c.b16 %v1288, %v1284
    %v1533 = vpack.c.b16 %v1293, %v1289
    %v1534 = vpack.c.b16 %v1294, %v1290
    %v1535 = vpack.c.b16 %v1295, %v1291
    %v1536 = vpack.c.b16 %v1296, %v1292
    %v1537 = vpack.c.b16 %v1301, %v1297
    %v1538 = vpack.c.b16 %v1302, %v1298
    %v1539 = vpack.c.b16 %v1303, %v1299
    %v1540 = vpack.c.b16 %v1304, %v1300
    %v1541 = vpack.c.b16 %v1309, %v1305
    %v1542 = vpack.c.b16 %v1310, %v1306
    %v1543 = vpack.c.b16 %v1311, %v1307
    %v1544 = vpack.c.b16 %v1312, %v1308
    %v1545 = vpack.c.b16 %v1317, %v1313
    %v1546 = vpack.c.b16 %v1318, %v1314
    %v1547 = vpack.c.b16 %v1319, %v1315
    %v1548 = vpack.c.b16 %v1320, %v1316
    %v1549 = vpack.c.b16 %v1325, %v1321
    %v1550 = vpack.c.b16 %v1326, %v1322
    %v1551 = vpack.c.b16 %v1327, %v1323
    %v1552 = vpack.c.b16 %v1328, %v1324
    %v1553 = vpack.c.b16 %v1333, %v1329
    %v1554 = vpack.c.b16 %v1334, %v1330
    %v1555 = vpack.c.b16 %v1335, %v1331
    %v1556 = vpack.c.b16 %v1336, %v1332
    %v1557 = vpack.c.b16 %v1341, %v1337
    %v1558 = vpack.c.b16 %v1342, %v1338
    %v1559 = vpack.c.b16 %v1343, %v1339
    %v1560 = vpack.c.b16 %v1344, %v1340
    %v1561 = vpack.c.b16 %v1349, %v1345
    %v1562 = vpack.c.b16 %v1350, %v1346
    %v1563 = vpack.c.b16 %v1351, %v1347
    %v1564 = vpack.c.b16 %v1352, %v1348
    %v1565 = vpack.c.b16 %v1357, %v1353
    %v1566 = vpack.c.b16 %v1358, %v1354
    %v1567 = vpack.c.b16 %v1359, %v1355
    %v1568 = vpack.c.b16 %v1360, %v1356
    %v1569 = vpack.c.b16 %v1365, %v1361
    %v1570 = vpack.c.b16 %v1366, %v1362
    %v1571 = vpack.c.b16 %v1367, %v1363
    %v1572 = vpack.c.b16 %v1368, %v1364
    %v1573 = vpack.c.b16 %v1373, %v1369
    %v1574 = vpack.c.b16 %v1374, %v1370
    %v1575 = vpack.c.b16 %v1375, %v1371
    %v1576 = vpack.c.b16 %v1376, %v1372
    %v1577 = vpack.c.b16 %v1381, %v1377
    %v1578 = vpack.c.b16 %v1382, %v1378
    %v1579 = vpack.c.b16 %v1383, %v1379
    %v1580 = vpack.c.b16 %v1384, %v1380
    %v1581 = vpack.c.b16 %v1389, %v1385
    %v1582 = vpack.c.b16 %v1390, %v1386
    %v1583 = vpack.c.b16 %v1391, %v1387
    %v1584 = vpack.c.b16 %v1392, %v1388
    %v1585 = vpack.c.b16 %v1397, %v1393
    %v1586 = vpack.c.b16 %v1398, %v1394
    %v1587 = vpack.c.b16 %v1399, %v1395
    %v1588 = vpack.c.b16 %v1400, %v1396
    %v1589 = vpack.c.b16 %v1405, %v1401
    %v1590 = vpack.c.b16 %v1406, %v1402
    %v1591 = vpack.c.b16 %v1407, %v1403
    %v1592 = vpack.c.b16 %v1408, %v1404
    %v1593 = vpack.c.b16 %v1413, %v1409
    %v1594 = vpack.c.b16 %v1414, %v1410
    %v1595 = vpack.c.b16 %v1415, %v1411
    %v1596 = vpack.c.b16 %v1416, %v1412
    %v1597 = vpack.c.b16 %v1421, %v1417
    %v1598 = vpack.c.b16 %v1422, %v1418
    %v1599 = vpack.c.b16 %v1423, %v1419
    %v1600 = vpack.c.b16 %v1424, %v1420
    %v1601 = vpack.c.b16 %v1429, %v1425
    %v1602 = vpack.c.b16 %v1430, %v1426
    %v1603 = vpack.c.b16 %v1431, %v1427
    %v1604 = vpack.c.b16 %v1432, %v1428
    %v1605 = vpack.c.b16 %v1437, %v1433
    %v1606 = vpack.c.b16 %v1438, %v1434
    %v1607 = vpack.c.b16 %v1439, %v1435
    %v1608 = vpack.c.b16 %v1440, %v1436
    %v1609 = vpack.c.b16 %v1445, %v1441
    %v1610 = vpack.c.b16 %v1446, %v1442
    %v1611 = vpack.c.b16 %v1447, %v1443
    %v1612 = vpack.c.b16 %v1448, %v1444
    %v1613 = vpack.c.b16 %v1453, %v1449
    %v1614 = vpack.c.b16 %v1454, %v1450
    %v1615 = vpack.c.b16 %v1455, %v1451
    %v1616 = vpack.c.b16 %v1456, %v1452
    %v1617 = vpack.c.b16 %v1461, %v1457
    %v1618 = vpack.c.b16 %v1462, %v1458
    %v1619 = vpack.c.b16 %v1463, %v1459
    %v1620 = vpack.c.b16 %v1464, %v1460
    %v1621 = vpack.c.b16 %v1469, %v1465
    %v1622 = vpack.c.b16 %v1470, %v1466
    %v1623 = vpack.c.b16 %v1471, %v1467
    %v1624 = vpack.c.b16 %v1472, %v1468
    %v1625 = vpack.c.b16 %v1477, %v1473
    %v1626 = vpack.c.b16 %v1478, %v1474
    %v1627 = vpack.c.b16 %v1479, %v1475
    %v1628 = vpack.c.b16 %v1480, %v1476
    %v1629 = vpack.c.b16 %v1485, %v1481
    %v1630 = vpack.c.b16 %v1486, %v1482
    %v1631 = vpack.c.b16 %v1487, %v1483
    %v1632 = vpack.c.b16 %v1488, %v1484
    %v1633 = vpack.c.b16 %v1493, %v1489
    %v1634 = vpack.c.b16 %v1494, %v1490
    %v1635 = vpack.c.b16 %v1495, %v1491
    %v1636 = vpack.c.b16 %v1496, %v1492
    %v1637 = vpack.c.b16 %v1501, %v1497
    %v1638 = vpack.c.b16 %v1502, %v1498
    %v1639 = vpack.c.b16 %v1503, %v1499
    %v1640 = vpack.c.b16 %v1504, %v1500
    %v1641 = vpack.c.b16 %v1509, %v1505
    %v1642 = vpack.c.b16 %v1510, %v1506
    %v1643 = vpack.c.b16 %v1511, %v1507
    %v1644 = vpack.c.b16 %v1512, %v1508
    %v1645 = vpack.c.b16 %v1517, %v1513
    %v1646 = vpack.c.b16 %v1518, %v1514
    %v1647 = vpack.c.b16 %v1519, %v1515
    %v1648 = vpack.c.b16 %v1520, %v1516
    %1777 = vmatprep.subr.bf16.mxu0 %v1522
    %1778 = vmatpush1.bf16.msra.mxu0 %v1521
    %1779 = vmatprep.subr.bf16.mxu0 %v1526
    %1780 = vmatpush1.bf16.msra.mxu0 %v1525
    %1781 = vmatprep.subr.bf16.mxu0 %v1530
    %1782 = vmatpush1.bf16.msra.mxu0 %v1529
    %1783 = vmatprep.subr.bf16.mxu0 %v1534
    %1784 = vmatpush1.bf16.msra.mxu0 %v1533
    %1785 = vmatprep.subr.bf16.mxu0 %v1538
    %1786 = vmatpush1.bf16.msra.mxu0 %v1537
    %1787 = vmatprep.subr.bf16.mxu0 %v1542
    %1788 = vmatpush1.bf16.msra.mxu0 %v1541
    %1789 = vmatprep.subr.bf16.mxu0 %v1546
    %1790 = vmatpush1.bf16.msra.mxu0 %v1545
    %1791 = vmatprep.subr.bf16.mxu0 %v1550
    %1792 = vmatpush1.bf16.msra.mxu0 %v1549
    %1793 = vmatprep.subr.bf16.mxu0 %v1554
    %1794 = vmatpush1.bf16.msra.mxu0 %v1553
    %1795 = vmatprep.subr.bf16.mxu0 %v1558
    %1796 = vmatpush1.bf16.msra.mxu0 %v1557
    %1797 = vmatprep.subr.bf16.mxu0 %v1562
    %1798 = vmatpush1.bf16.msra.mxu0 %v1561
    %1799 = vmatprep.subr.bf16.mxu0 %v1566
    %1800 = vmatpush1.bf16.msra.mxu0 %v1565
    %1801 = vmatprep.subr.bf16.mxu0 %v1570
    %1802 = vmatpush1.bf16.msra.mxu0 %v1569
    %1803 = vmatprep.subr.bf16.mxu0 %v1574
    %1804 = vmatpush1.bf16.msra.mxu0 %v1573
    %1805 = vmatprep.subr.bf16.mxu0 %v1578
    %1806 = vmatpush1.bf16.msra.mxu0 %v1577
    %1807 = vmatprep.subr.bf16.mxu0 %v1582
    %1808 = vmatpush1.bf16.msra.mxu0 %v1581
    %1809 = vmatprep.mubr.bf16.mxu0 %v985
    %1810 = vmatmul.mubr.bf16.gmra.mrb[0].mxu0 %v984
    %v1811 = vpop.f32.mrb[0].mxu0
    %v1812 = vadd.f32 %v1120, %v1811
    %v1813 = vpop.f32.mrb[0].mxu0
    %v1814 = vadd.f32 %v1124, %v1813
    %v1815 = vpop.f32.mrb[0].mxu0
    %v1816 = vadd.f32 %v1120, %v1815
    %v1817 = vpop.f32.mrb[0].mxu0
    %v1818 = vadd.f32 %v1124, %v1817
    %1819 = vdwg.mxu0
    %1820 = vmatprep.subr.bf16.mxu0 %v1586
    %1821 = vmatpush1.bf16.msra.mxu0 %v1585
    %1822 = vmatprep.subr.bf16.mxu0 %v1590
    %1823 = vmatpush1.bf16.msra.mxu0 %v1589
    %1824 = vmatprep.subr.bf16.mxu0 %v1594
    %1825 = vmatpush1.bf16.msra.mxu0 %v1593
    %1826 = vmatprep.subr.bf16.mxu0 %v1598
    %1827 = vmatpush1.bf16.msra.mxu0 %v1597
    %1828 = vmatprep.subr.bf16.mxu0 %v1602
    %1829 = vmatpush1.bf16.msra.mxu0 %v1601
    %1830 = vmatprep.subr.bf16.mxu0 %v1606
    %1831 = vmatpush1.bf16.msra.mxu0 %v1605
    %1832 = vmatprep.subr.bf16.mxu0 %v1610
    %1833 = vmatpush1.bf16.msra.mxu0 %v1609
    %1834 = vmatprep.subr.bf16.mxu0 %v1614
    %1835 = vmatpush1.bf16.msra.mxu0 %v1613
    %1836 = vmatprep.subr.bf16.mxu0 %v1618
    %1837 = vmatpush1.bf16.msra.mxu0 %v1617
    %1838 = vmatprep.subr.bf16.mxu0 %v1622
    %1839 = vmatpush1.bf16.msra.mxu0 %v1621
    %1840 = vmatprep.subr.bf16.mxu0 %v1626
    %1841 = vmatpush1.bf16.msra.mxu0 %v1625
    %1842 = vmatprep.subr.bf16.mxu0 %v1630
    %1843 = vmatpush1.bf16.msra.mxu0 %v1629
    %1844 = vmatprep.subr.bf16.mxu0 %v1634
    %1845 = vmatpush1.bf16.msra.mxu0 %v1633
    %1846 = vmatprep.subr.bf16.mxu0 %v1638
    %1847 = vmatpush1.bf16.msra.mxu0 %v1637
    %1848 = vmatprep.subr.bf16.mxu0 %v1642
    %1849 = vmatpush1.bf16.msra.mxu0 %v1641
    %1850 = vmatprep.subr.bf16.mxu0 %v1646
    %1851 = vmatpush1.bf16.msra.mxu0 %v1645
    %1852 = vmatprep.mubr.bf16.mxu0 %v987
    %1853 = vmatmul.mubr.bf16.gmra.mrb[0].mxu0 %v986
    %v1854 = vpop.f32.mrb[0].mxu0
    %v1855 = vadd.f32 %v1812, %v1854
    %v1856 = vpop.f32.mrb[0].mxu0
    %v1857 = vadd.f32 %v1814, %v1856
    %v1858 = vpop.f32.mrb[0].mxu0
    %v1859 = vadd.f32 %v1816, %v1858
    %v1860 = vpop.f32.mrb[0].mxu0
    %v1861 = vadd.f32 %v1818, %v1860
    %1862 = vdwg.mxu0
    %1863 = vmatprep.subr.bf16.mxu0 %v1524
    %1864 = vmatpush1.bf16.msra.mxu0 %v1523
    %1865 = vmatprep.subr.bf16.mxu0 %v1528
    %1866 = vmatpush1.bf16.msra.mxu0 %v1527
    %1867 = vmatprep.subr.bf16.mxu0 %v1532
    %1868 = vmatpush1.bf16.msra.mxu0 %v1531
    %1869 = vmatprep.subr.bf16.mxu0 %v1536
    %1870 = vmatpush1.bf16.msra.mxu0 %v1535
    %1871 = vmatprep.subr.bf16.mxu0 %v1540
    %1872 = vmatpush1.bf16.msra.mxu0 %v1539
    %1873 = vmatprep.subr.bf16.mxu0 %v1544
    %1874 = vmatpush1.bf16.msra.mxu0 %v1543
    %1875 = vmatprep.subr.bf16.mxu0 %v1548
    %1876 = vmatpush1.bf16.msra.mxu0 %v1547
    %1877 = vmatprep.subr.bf16.mxu0 %v1552
    %1878 = vmatpush1.bf16.msra.mxu0 %v1551
    %1879 = vmatprep.subr.bf16.mxu0 %v1556
    %1880 = vmatpush1.bf16.msra.mxu0 %v1555
    %1881 = vmatprep.subr.bf16.mxu0 %v1560
    %1882 = vmatpush1.bf16.msra.mxu0 %v1559
    %1883 = vmatprep.subr.bf16.mxu0 %v1564
    %1884 = vmatpush1.bf16.msra.mxu0 %v1563
    %1885 = vmatprep.subr.bf16.mxu0 %v1568
    %1886 = vmatpush1.bf16.msra.mxu0 %v1567
    %1887 = vmatprep.subr.bf16.mxu0 %v1572
    %1888 = vmatpush1.bf16.msra.mxu0 %v1571
    %1889 = vmatprep.subr.bf16.mxu0 %v1576
    %1890 = vmatpush1.bf16.msra.mxu0 %v1575
    %1891 = vmatprep.subr.bf16.mxu0 %v1580
    %1892 = vmatpush1.bf16.msra.mxu0 %v1579
    %1893 = vmatprep.subr.bf16.mxu0 %v1584
    %1894 = vmatpush1.bf16.msra.mxu0 %v1583
    %1895 = vmatprep.mubr.bf16.mxu0 %v985
    %1896 = vmatmul.mubr.bf16.gmra.mrb[0].mxu0 %v984
    %v1897 = vpop.f32.mrb[0].mxu0
    %v1898 = vadd.f32 %v1128, %v1897
    %v1899 = vpop.f32.mrb[0].mxu0
    %v1900 = vadd.f32 %v1132, %v1899
    %v1901 = vpop.f32.mrb[0].mxu0
    %v1902 = vadd.f32 %v1128, %v1901
    %v1903 = vpop.f32.mrb[0].mxu0
    %v1904 = vadd.f32 %v1132, %v1903
    %1905 = vdwg.mxu0
    %1906 = vmatprep.subr.bf16.mxu0 %v1588
    %1907 = vmatpush1.bf16.msra.mxu0 %v1587
    %1908 = vmatprep.subr.bf16.mxu0 %v1592
    %1909 = vmatpush1.bf16.msra.mxu0 %v1591
    %1910 = vmatprep.subr.bf16.mxu0 %v1596
    %1911 = vmatpush1.bf16.msra.mxu0 %v1595
    %1912 = vmatprep.subr.bf16.mxu0 %v1600
    %1913 = vmatpush1.bf16.msra.mxu0 %v1599
    %1914 = vmatprep.subr.bf16.mxu0 %v1604
    %1915 = vmatpush1.bf16.msra.mxu0 %v1603
    %1916 = vmatprep.subr.bf16.mxu0 %v1608
    %1917 = vmatpush1.bf16.msra.mxu0 %v1607
    %1918 = vmatprep.subr.bf16.mxu0 %v1612
    %1919 = vmatpush1.bf16.msra.mxu0 %v1611
    %1920 = vmatprep.subr.bf16.mxu0 %v1616
    %1921 = vmatpush1.bf16.msra.mxu0 %v1615
    %1922 = vmatprep.subr.bf16.mxu0 %v1620
    %1923 = vmatpush1.bf16.msra.mxu0 %v1619
    %1924 = vmatprep.subr.bf16.mxu0 %v1624
    %1925 = vmatpush1.bf16.msra.mxu0 %v1623
    %1926 = vmatprep.subr.bf16.mxu0 %v1628
    %1927 = vmatpush1.bf16.msra.mxu0 %v1627
    %1928 = vmatprep.subr.bf16.mxu0 %v1632
    %1929 = vmatpush1.bf16.msra.mxu0 %v1631
    %1930 = vmatprep.subr.bf16.mxu0 %v1636
    %1931 = vmatpush1.bf16.msra.mxu0 %v1635
    %1932 = vmatprep.subr.bf16.mxu0 %v1640
    %1933 = vmatpush1.bf16.msra.mxu0 %v1639
    %1934 = vmatprep.subr.bf16.mxu0 %v1644
    %1935 = vmatpush1.bf16.msra.mxu0 %v1643
    %1936 = vmatprep.subr.bf16.mxu0 %v1648
    %1937 = vmatpush1.bf16.msra.mxu0 %v1647
    %1938 = vmatprep.mubr.bf16.mxu0 %v987
    %1939 = vmatmul.mubr.bf16.gmra.mrb[0].mxu0 %v986
    %v1940 = vpop.f32.mrb[0].mxu0
    %v1941 = vadd.f32 %v1898, %v1940
    %v1942 = vpop.f32.mrb[0].mxu0
    %v1943 = vadd.f32 %v1900, %v1942
    %v1944 = vpop.f32.mrb[0].mxu0
    %v1945 = vadd.f32 %v1902, %v1944
    %v1946 = vpop.f32.mrb[0].mxu0
    %v1947 = vadd.f32 %v1904, %v1946
    %1948 = vdwg.mxu0
    %v1949 = vadd.f32 %v1855, %v1857
    %v1950 = vadd.f32 %v1949, %v1941
    %v1951 = vadd.f32 %v1950, %v1943
    %1952 = vadd.xlane.f32.xlu0 %v1951
    %v1953 = vpop.xlane.xlu0 %1952
    %v1954 = vadd.f32 %v1859, %v1861
    %v1955 = vadd.f32 %v1954, %v1945
    %v1956 = vadd.f32 %v1955, %v1947
    %1957 = vadd.xlane.f32.xlu0 %v1956
    %v1958 = vpop.xlane.xlu0 %1957
    %v1959 = vmul.f32 %v1953, %v875
    %v1960 = vmul.f32 %v1958, %v875
    %v1961 = vsub.f32 %v1855, %v1959
    %v1962 = vsub.f32 %v1857, %v1959
    %v1963 = vsub.f32 %v1941, %v1959
    %v1964 = vsub.f32 %v1943, %v1959
    %v1965 = vsub.f32 %v1859, %v1960
    %v1966 = vsub.f32 %v1861, %v1960
    %v1967 = vsub.f32 %v1945, %v1960
    %v1968 = vsub.f32 %v1947, %v1960
    %v1969 = vmul.f32 %v1961, %v1961
    %v1970 = vmul.f32 %v1962, %v1962
    %v1971 = vmul.f32 %v1963, %v1963
    %v1972 = vmul.f32 %v1964, %v1964
    %v1973 = vmul.f32 %v1965, %v1965
    %v1974 = vmul.f32 %v1966, %v1966
    %v1975 = vmul.f32 %v1967, %v1967
    %v1976 = vmul.f32 %v1968, %v1968
    %v1977 = vadd.f32 %v1969, %v1970
    %v1978 = vadd.f32 %v1977, %v1971
    %v1979 = vadd.f32 %v1978, %v1972
    %1980 = vadd.xlane.f32.xlu0 %v1979
    %v1981 = vpop.xlane.xlu0 %1980
    %v1982 = vadd.f32 %v1973, %v1974
    %v1983 = vadd.f32 %v1982, %v1975
    %v1984 = vadd.f32 %v1983, %v1976
    %1985 = vadd.xlane.f32.xlu0 %v1984
    %v1986 = vpop.xlane.xlu0 %1985
    %v1987 = vmul.f32 %v1981, %v875
    %v1988 = vmul.f32 %v1986, %v875
    %v1989 = vadd.f32 %v1987, 1e-05
    %v1990 = vadd.f32 %v1988, 1e-05
    %v1991 = vrsqrt.pop %v1989
    %v1992 = vrsqrt.pop %v1990
    %v1993 = vmul.f32 %v1961, %v1991
    %v1994 = vmul.f32 %v1962, %v1991
    %v1995 = vmul.f32 %v1963, %v1991
    %v1996 = vmul.f32 %v1964, %v1991
    %v1997 = vmul.f32 %v1965, %v1992
    %v1998 = vmul.f32 %v1966, %v1992
    %v1999 = vmul.f32 %v1967, %v1992
    %v2000 = vmul.f32 %v1968, %v1992
    %v2002 = vlaneseq
    %v2003 = vshrl.u32 %v2002, 7
    %v2004 = vsub.s32 0, %v2003
    %v2005 = vrot.slane %v75, %v2004
    %v2006 = vlaneseq
    %v2007 = vshrl.u32 %v2006, 7
    %v2008 = vsub.s32 1, %v2007
    %v2009 = vrot.slane %v75, %v2008
    %v2010 = vlaneseq
    %v2011 = vshrl.u32 %v2010, 7
    %v2012 = vsub.s32 2, %v2011
    %v2013 = vrot.slane %v75, %v2012
    %v2014 = vlaneseq
    %v2015 = vshrl.u32 %v2014, 7
    %v2016 = vsub.s32 3, %v2015
    %v2017 = vrot.slane %v75, %v2016
    %v2022 = vmul.f32 %v1993, %v2005
    %v2023 = vmul.f32 %v1994, %v2009
    %v2024 = vmul.f32 %v1995, %v2013
    %v2025 = vmul.f32 %v1996, %v2017
    %v2026 = vmul.f32 %v1997, %v2005
    %v2027 = vmul.f32 %v1998, %v2009
    %v2028 = vmul.f32 %v1999, %v2013
    %v2029 = vmul.f32 %v2000, %v2017
    %v2031 = vlaneseq
    %v2032 = vshrl.u32 %v2031, 7
    %v2033 = vsub.s32 0, %v2032
    %v2034 = vrot.slane %v77, %v2033
    %v2035 = vlaneseq
    %v2036 = vshrl.u32 %v2035, 7
    %v2037 = vsub.s32 1, %v2036
    %v2038 = vrot.slane %v77, %v2037
    %v2039 = vlaneseq
    %v2040 = vshrl.u32 %v2039, 7
    %v2041 = vsub.s32 2, %v2040
    %v2042 = vrot.slane %v77, %v2041
    %v2043 = vlaneseq
    %v2044 = vshrl.u32 %v2043, 7
    %v2045 = vsub.s32 3, %v2044
    %v2046 = vrot.slane %v77, %v2045
    %v2051 = vadd.f32 %v2022, %v2034
    %v2052 = vadd.f32 %v2023, %v2038
    %v2053 = vadd.f32 %v2024, %v2042
    %v2054 = vadd.f32 %v2025, %v2046
    %v2055 = vadd.f32 %v2026, %v2034
    %v2056 = vadd.f32 %v2027, %v2038
    %v2057 = vadd.f32 %v2028, %v2042
    %v2058 = vadd.f32 %v2029, %v2046
    %v2059 = vmax.f32 %v2051, 0.0
    %v2060 = vmax.f32 %v2052, 0.0
    %v2061 = vmax.f32 %v2053, 0.0
    %v2062 = vmax.f32 %v2054, 0.0
    %v2063 = vmax.f32 %v2055, 0.0
    %v2064 = vmax.f32 %v2056, 0.0
    %v2065 = vmax.f32 %v2057, 0.0
    %v2066 = vmax.f32 %v2058, 0.0
    %v2067 = vpack.c.bf16 %v2063, %v2059
    %v2068 = vpack.c.bf16 %v2064, %v2060
    %v2069 = vpack.c.bf16 %v2065, %v2061
    %v2070 = vpack.c.bf16 %v2066, %v2062
    %v2071 = vld [vmem:[#allocation7] sm:$0xff]
    %v2072 = vld [vmem:[#allocation7 + $0x8] sm:$0xff]
    %v2073 = vld [vmem:[#allocation7 + $0x10] sm:$0xff]
    %v2074 = vld [vmem:[#allocation7 + $0x18] sm:$0xff]
    %v2075 = vld [vmem:[#allocation7 + $0x20] sm:$0xff]
    %v2076 = vld [vmem:[#allocation7 + $0x28] sm:$0xff]
    %v2077 = vld [vmem:[#allocation7 + $0x30] sm:$0xff]
    %v2078 = vld [vmem:[#allocation7 + $0x38] sm:$0xff]
    %v2079 = vld [vmem:[#allocation7 + $0x40] sm:$0xff]
    %v2080 = vld [vmem:[#allocation7 + $0x48] sm:$0xff]
    %v2081 = vld [vmem:[#allocation7 + $0x50] sm:$0xff]
    %v2082 = vld [vmem:[#allocation7 + $0x58] sm:$0xff]
    %v2083 = vld [vmem:[#allocation7 + $0x60] sm:$0xff]
    %v2084 = vld [vmem:[#allocation7 + $0x68] sm:$0xff]
    %v2085 = vld [vmem:[#allocation7 + $0x70] sm:$0xff]
    %v2086 = vld [vmem:[#allocation7 + $0x78] sm:$0xff]
    %v2087 = vld [vmem:[#allocation7 + $0x80] sm:$0xff]
    %v2088 = vld [vmem:[#allocation7 + $0x88] sm:$0xff]
    %v2089 = vld [vmem:[#allocation7 + $0x90] sm:$0xff]
    %v2090 = vld [vmem:[#allocation7 + $0x98] sm:$0xff]
    %v2091 = vld [vmem:[#allocation7 + $0xa0] sm:$0xff]
    %v2092 = vld [vmem:[#allocation7 + $0xa8] sm:$0xff]
    %v2093 = vld [vmem:[#allocation7 + $0xb0] sm:$0xff]
    %v2094 = vld [vmem:[#allocation7 + $0xb8] sm:$0xff]
    %v2095 = vld [vmem:[#allocation7 + $0xc0] sm:$0xff]
    %v2096 = vld [vmem:[#allocation7 + $0xc8] sm:$0xff]
    %v2097 = vld [vmem:[#allocation7 + $0xd0] sm:$0xff]
    %v2098 = vld [vmem:[#allocation7 + $0xd8] sm:$0xff]
    %v2099 = vld [vmem:[#allocation7 + $0xe0] sm:$0xff]
    %v2100 = vld [vmem:[#allocation7 + $0xe8] sm:$0xff]
    %v2101 = vld [vmem:[#allocation7 + $0xf0] sm:$0xff]
    %v2102 = vld [vmem:[#allocation7 + $0xf8] sm:$0xff]
    %v2103 = vld [vmem:[#allocation7 + $0x100] sm:$0xff]
    %v2104 = vld [vmem:[#allocation7 + $0x108] sm:$0xff]
    %v2105 = vld [vmem:[#allocation7 + $0x110] sm:$0xff]
    %v2106 = vld [vmem:[#allocation7 + $0x118] sm:$0xff]
    %v2107 = vld [vmem:[#allocation7 + $0x120] sm:$0xff]
    %v2108 = vld [vmem:[#allocation7 + $0x128] sm:$0xff]
    %v2109 = vld [vmem:[#allocation7 + $0x130] sm:$0xff]
    %v2110 = vld [vmem:[#allocation7 + $0x138] sm:$0xff]
    %v2111 = vld [vmem:[#allocation7 + $0x140] sm:$0xff]
    %v2112 = vld [vmem:[#allocation7 + $0x148] sm:$0xff]
    %v2113 = vld [vmem:[#allocation7 + $0x150] sm:$0xff]
    %v2114 = vld [vmem:[#allocation7 + $0x158] sm:$0xff]
    %v2115 = vld [vmem:[#allocation7 + $0x160] sm:$0xff]
    %v2116 = vld [vmem:[#allocation7 + $0x168] sm:$0xff]
    %v2117 = vld [vmem:[#allocation7 + $0x170] sm:$0xff]
    %v2118 = vld [vmem:[#allocation7 + $0x178] sm:$0xff]
    %v2119 = vld [vmem:[#allocation7 + $0x180] sm:$0xff]
    %v2120 = vld [vmem:[#allocation7 + $0x188] sm:$0xff]
    %v2121 = vld [vmem:[#allocation7 + $0x190] sm:$0xff]
    %v2122 = vld [vmem:[#allocation7 + $0x198] sm:$0xff]
    %v2123 = vld [vmem:[#allocation7 + $0x1a0] sm:$0xff]
    %v2124 = vld [vmem:[#allocation7 + $0x1a8] sm:$0xff]
    %v2125 = vld [vmem:[#allocation7 + $0x1b0] sm:$0xff]
    %v2126 = vld [vmem:[#allocation7 + $0x1b8] sm:$0xff]
    %v2127 = vld [vmem:[#allocation7 + $0x1c0] sm:$0xff]
    %v2128 = vld [vmem:[#allocation7 + $0x1c8] sm:$0xff]
    %v2129 = vld [vmem:[#allocation7 + $0x1d0] sm:$0xff]
    %v2130 = vld [vmem:[#allocation7 + $0x1d8] sm:$0xff]
    %v2131 = vld [vmem:[#allocation7 + $0x1e0] sm:$0xff]
    %v2132 = vld [vmem:[#allocation7 + $0x1e8] sm:$0xff]
    %v2133 = vld [vmem:[#allocation7 + $0x1f0] sm:$0xff]
    %v2134 = vld [vmem:[#allocation7 + $0x1f8] sm:$0xff]
    %v2136 = vlaneseq
    %v2137 = vshrl.u32 %v2136, 7
    %v2138 = vsub.s32 0, %v2137
    %v2139 = vrot.slane %v79, %v2138
    %v2140 = vlaneseq
    %v2141 = vshrl.u32 %v2140, 7
    %v2142 = vsub.s32 1, %v2141
    %v2143 = vrot.slane %v79, %v2142
    %v2210 = vunpack.c.l.b16 %v2071
    %v2211 = vunpack.c.h.b16 %v2071
    %v2212 = vunpack.c.l.b16 %v2072
    %v2213 = vunpack.c.h.b16 %v2072
    %v2214 = vunpack.c.l.b16 %v2073
    %v2215 = vunpack.c.h.b16 %v2073
    %v2216 = vunpack.c.l.b16 %v2074
    %v2217 = vunpack.c.h.b16 %v2074
    %v2218 = vunpack.c.l.b16 %v2075
    %v2219 = vunpack.c.h.b16 %v2075
    %v2220 = vunpack.c.l.b16 %v2076
    %v2221 = vunpack.c.h.b16 %v2076
    %v2222 = vunpack.c.l.b16 %v2077
    %v2223 = vunpack.c.h.b16 %v2077
    %v2224 = vunpack.c.l.b16 %v2078
    %v2225 = vunpack.c.h.b16 %v2078
    %v2226 = vunpack.c.l.b16 %v2079
    %v2227 = vunpack.c.h.b16 %v2079
    %v2228 = vunpack.c.l.b16 %v2080
    %v2229 = vunpack.c.h.b16 %v2080
    %v2230 = vunpack.c.l.b16 %v2081
    %v2231 = vunpack.c.h.b16 %v2081
    %v2232 = vunpack.c.l.b16 %v2082
    %v2233 = vunpack.c.h.b16 %v2082
    %v2234 = vunpack.c.l.b16 %v2083
    %v2235 = vunpack.c.h.b16 %v2083
    %v2236 = vunpack.c.l.b16 %v2084
    %v2237 = vunpack.c.h.b16 %v2084
    %v2238 = vunpack.c.l.b16 %v2085
    %v2239 = vunpack.c.h.b16 %v2085
    %v2240 = vunpack.c.l.b16 %v2086
    %v2241 = vunpack.c.h.b16 %v2086
    %v2242 = vunpack.c.l.b16 %v2087
    %v2243 = vunpack.c.h.b16 %v2087
    %v2244 = vunpack.c.l.b16 %v2088
    %v2245 = vunpack.c.h.b16 %v2088
    %v2246 = vunpack.c.l.b16 %v2089
    %v2247 = vunpack.c.h.b16 %v2089
    %v2248 = vunpack.c.l.b16 %v2090
    %v2249 = vunpack.c.h.b16 %v2090
    %v2250 = vunpack.c.l.b16 %v2091
    %v2251 = vunpack.c.h.b16 %v2091
    %v2252 = vunpack.c.l.b16 %v2092
    %v2253 = vunpack.c.h.b16 %v2092
    %v2254 = vunpack.c.l.b16 %v2093
    %v2255 = vunpack.c.h.b16 %v2093
    %v2256 = vunpack.c.l.b16 %v2094
    %v2257 = vunpack.c.h.b16 %v2094
    %v2258 = vunpack.c.l.b16 %v2095
    %v2259 = vunpack.c.h.b16 %v2095
    %v2260 = vunpack.c.l.b16 %v2096
    %v2261 = vunpack.c.h.b16 %v2096
    %v2262 = vunpack.c.l.b16 %v2097
    %v2263 = vunpack.c.h.b16 %v2097
    %v2264 = vunpack.c.l.b16 %v2098
    %v2265 = vunpack.c.h.b16 %v2098
    %v2266 = vunpack.c.l.b16 %v2099
    %v2267 = vunpack.c.h.b16 %v2099
    %v2268 = vunpack.c.l.b16 %v2100
    %v2269 = vunpack.c.h.b16 %v2100
    %v2270 = vunpack.c.l.b16 %v2101
    %v2271 = vunpack.c.h.b16 %v2101
    %v2272 = vunpack.c.l.b16 %v2102
    %v2273 = vunpack.c.h.b16 %v2102
    %v2274 = vunpack.c.l.b16 %v2103
    %v2275 = vunpack.c.h.b16 %v2103
    %v2276 = vunpack.c.l.b16 %v2104
    %v2277 = vunpack.c.h.b16 %v2104
    %v2278 = vunpack.c.l.b16 %v2105
    %v2279 = vunpack.c.h.b16 %v2105
    %v2280 = vunpack.c.l.b16 %v2106
    %v2281 = vunpack.c.h.b16 %v2106
    %v2282 = vunpack.c.l.b16 %v2107
    %v2283 = vunpack.c.h.b16 %v2107
    %v2284 = vunpack.c.l.b16 %v2108
    %v2285 = vunpack.c.h.b16 %v2108
    %v2286 = vunpack.c.l.b16 %v2109
    %v2287 = vunpack.c.h.b16 %v2109
    %v2288 = vunpack.c.l.b16 %v2110
    %v2289 = vunpack.c.h.b16 %v2110
    %v2290 = vunpack.c.l.b16 %v2111
    %v2291 = vunpack.c.h.b16 %v2111
    %v2292 = vunpack.c.l.b16 %v2112
    %v2293 = vunpack.c.h.b16 %v2112
    %v2294 = vunpack.c.l.b16 %v2113
    %v2295 = vunpack.c.h.b16 %v2113
    %v2296 = vunpack.c.l.b16 %v2114
    %v2297 = vunpack.c.h.b16 %v2114
    %v2298 = vunpack.c.l.b16 %v2115
    %v2299 = vunpack.c.h.b16 %v2115
    %v2300 = vunpack.c.l.b16 %v2116
    %v2301 = vunpack.c.h.b16 %v2116
    %v2302 = vunpack.c.l.b16 %v2117
    %v2303 = vunpack.c.h.b16 %v2117
    %v2304 = vunpack.c.l.b16 %v2118
    %v2305 = vunpack.c.h.b16 %v2118
    %v2306 = vunpack.c.l.b16 %v2119
    %v2307 = vunpack.c.h.b16 %v2119
    %v2308 = vunpack.c.l.b16 %v2120
    %v2309 = vunpack.c.h.b16 %v2120
    %v2310 = vunpack.c.l.b16 %v2121
    %v2311 = vunpack.c.h.b16 %v2121
    %v2312 = vunpack.c.l.b16 %v2122
    %v2313 = vunpack.c.h.b16 %v2122
    %v2314 = vunpack.c.l.b16 %v2123
    %v2315 = vunpack.c.h.b16 %v2123
    %v2316 = vunpack.c.l.b16 %v2124
    %v2317 = vunpack.c.h.b16 %v2124
    %v2318 = vunpack.c.l.b16 %v2125
    %v2319 = vunpack.c.h.b16 %v2125
    %v2320 = vunpack.c.l.b16 %v2126
    %v2321 = vunpack.c.h.b16 %v2126
    %v2322 = vunpack.c.l.b16 %v2127
    %v2323 = vunpack.c.h.b16 %v2127
    %v2324 = vunpack.c.l.b16 %v2128
    %v2325 = vunpack.c.h.b16 %v2128
    %v2326 = vunpack.c.l.b16 %v2129
    %v2327 = vunpack.c.h.b16 %v2129
    %v2328 = vunpack.c.l.b16 %v2130
    %v2329 = vunpack.c.h.b16 %v2130
    %v2330 = vunpack.c.l.b16 %v2131
    %v2331 = vunpack.c.h.b16 %v2131
    %v2332 = vunpack.c.l.b16 %v2132
    %v2333 = vunpack.c.h.b16 %v2132
    %v2334 = vunpack.c.l.b16 %v2133
    %v2335 = vunpack.c.h.b16 %v2133
    %v2336 = vunpack.c.l.b16 %v2134
    %v2337 = vunpack.c.h.b16 %v2134
    %v2338 = vpack.c.b16 %v2212, %v2210
    %v2339 = vpack.c.b16 %v2213, %v2211
    %v2340 = vpack.c.b16 %v2216, %v2214
    %v2341 = vpack.c.b16 %v2217, %v2215
    %v2342 = vpack.c.b16 %v2220, %v2218
    %v2343 = vpack.c.b16 %v2221, %v2219
    %v2344 = vpack.c.b16 %v2224, %v2222
    %v2345 = vpack.c.b16 %v2225, %v2223
    %v2346 = vpack.c.b16 %v2228, %v2226
    %v2347 = vpack.c.b16 %v2229, %v2227
    %v2348 = vpack.c.b16 %v2232, %v2230
    %v2349 = vpack.c.b16 %v2233, %v2231
    %v2350 = vpack.c.b16 %v2236, %v2234
    %v2351 = vpack.c.b16 %v2237, %v2235
    %v2352 = vpack.c.b16 %v2240, %v2238
    %v2353 = vpack.c.b16 %v2241, %v2239
    %v2354 = vpack.c.b16 %v2244, %v2242
    %v2355 = vpack.c.b16 %v2245, %v2243
    %v2356 = vpack.c.b16 %v2248, %v2246
    %v2357 = vpack.c.b16 %v2249, %v2247
    %v2358 = vpack.c.b16 %v2252, %v2250
    %v2359 = vpack.c.b16 %v2253, %v2251
    %v2360 = vpack.c.b16 %v2256, %v2254
    %v2361 = vpack.c.b16 %v2257, %v2255
    %v2362 = vpack.c.b16 %v2260, %v2258
    %v2363 = vpack.c.b16 %v2261, %v2259
    %v2364 = vpack.c.b16 %v2264, %v2262
    %v2365 = vpack.c.b16 %v2265, %v2263
    %v2366 = vpack.c.b16 %v2268, %v2266
    %v2367 = vpack.c.b16 %v2269, %v2267
    %v2368 = vpack.c.b16 %v2272, %v2270
    %v2369 = vpack.c.b16 %v2273, %v2271
    %v2370 = vpack.c.b16 %v2276, %v2274
    %v2371 = vpack.c.b16 %v2277, %v2275
    %v2372 = vpack.c.b16 %v2280, %v2278
    %v2373 = vpack.c.b16 %v2281, %v2279
    %v2374 = vpack.c.b16 %v2284, %v2282
    %v2375 = vpack.c.b16 %v2285, %v2283
    %v2376 = vpack.c.b16 %v2288, %v2286
    %v2377 = vpack.c.b16 %v2289, %v2287
    %v2378 = vpack.c.b16 %v2292, %v2290
    %v2379 = vpack.c.b16 %v2293, %v2291
    %v2380 = vpack.c.b16 %v2296, %v2294
    %v2381 = vpack.c.b16 %v2297, %v2295
    %v2382 = vpack.c.b16 %v2300, %v2298
    %v2383 = vpack.c.b16 %v2301, %v2299
    %v2384 = vpack.c.b16 %v2304, %v2302
    %v2385 = vpack.c.b16 %v2305, %v2303
    %v2386 = vpack.c.b16 %v2308, %v2306
    %v2387 = vpack.c.b16 %v2309, %v2307
    %v2388 = vpack.c.b16 %v2312, %v2310
    %v2389 = vpack.c.b16 %v2313, %v2311
    %v2390 = vpack.c.b16 %v2316, %v2314
    %v2391 = vpack.c.b16 %v2317, %v2315
    %v2392 = vpack.c.b16 %v2320, %v2318
    %v2393 = vpack.c.b16 %v2321, %v2319
    %v2394 = vpack.c.b16 %v2324, %v2322
    %v2395 = vpack.c.b16 %v2325, %v2323
    %v2396 = vpack.c.b16 %v2328, %v2326
    %v2397 = vpack.c.b16 %v2329, %v2327
    %v2398 = vpack.c.b16 %v2332, %v2330
    %v2399 = vpack.c.b16 %v2333, %v2331
    %v2400 = vpack.c.b16 %v2336, %v2334
    %v2401 = vpack.c.b16 %v2337, %v2335
    %2466 = vmatprep.subr.bf16.mxu0 %v2339
    %2467 = vmatpush1.bf16.msra.mxu0 %v2338
    %2468 = vmatprep.subr.bf16.mxu0 %v2341
    %2469 = vmatpush1.bf16.msra.mxu0 %v2340
    %2470 = vmatprep.subr.bf16.mxu0 %v2343
    %2471 = vmatpush1.bf16.msra.mxu0 %v2342
    %2472 = vmatprep.subr.bf16.mxu0 %v2345
    %2473 = vmatpush1.bf16.msra.mxu0 %v2344
    %2474 = vmatprep.subr.bf16.mxu0 %v2347
    %2475 = vmatpush1.bf16.msra.mxu0 %v2346
    %2476 = vmatprep.subr.bf16.mxu0 %v2349
    %2477 = vmatpush1.bf16.msra.mxu0 %v2348
    %2478 = vmatprep.subr.bf16.mxu0 %v2351
    %2479 = vmatpush1.bf16.msra.mxu0 %v2350
    %2480 = vmatprep.subr.bf16.mxu0 %v2353
    %2481 = vmatpush1.bf16.msra.mxu0 %v2352
    %2482 = vmatprep.subr.bf16.mxu0 %v2355
    %2483 = vmatpush1.bf16.msra.mxu0 %v2354
    %2484 = vmatprep.subr.bf16.mxu0 %v2357
    %2485 = vmatpush1.bf16.msra.mxu0 %v2356
    %2486 = vmatprep.subr.bf16.mxu0 %v2359
    %2487 = vmatpush1.bf16.msra.mxu0 %v2358
    %2488 = vmatprep.subr.bf16.mxu0 %v2361
    %2489 = vmatpush1.bf16.msra.mxu0 %v2360
    %2490 = vmatprep.subr.bf16.mxu0 %v2363
    %2491 = vmatpush1.bf16.msra.mxu0 %v2362
    %2492 = vmatprep.subr.bf16.mxu0 %v2365
    %2493 = vmatpush1.bf16.msra.mxu0 %v2364
    %2494 = vmatprep.subr.bf16.mxu0 %v2367
    %2495 = vmatpush1.bf16.msra.mxu0 %v2366
    %2496 = vmatprep.subr.bf16.mxu0 %v2369
    %2497 = vmatpush1.bf16.msra.mxu0 %v2368
    %2498 = vmatprep.mubr.bf16.mxu0 %v2068
    %2499 = vmatmul.mubr.bf16.gmra.mrb[0].mxu0 %v2067
    %v2500 = vpop.f32.mrb[0].mxu0
    %v2501 = vadd.f32 %v2139, %v2500
    %v2502 = vpop.f32.mrb[0].mxu0
    %v2503 = vadd.f32 %v2143, %v2502
    %v2504 = vpop.f32.mrb[0].mxu0
    %v2505 = vadd.f32 %v2139, %v2504
    %v2506 = vpop.f32.mrb[0].mxu0
    %v2507 = vadd.f32 %v2143, %v2506
    %2508 = vdwg.mxu0
    %2509 = vmatprep.subr.bf16.mxu0 %v2371
    %2510 = vmatpush1.bf16.msra.mxu0 %v2370
    %2511 = vmatprep.subr.bf16.mxu0 %v2373
    %2512 = vmatpush1.bf16.msra.mxu0 %v2372
    %2513 = vmatprep.subr.bf16.mxu0 %v2375
    %2514 = vmatpush1.bf16.msra.mxu0 %v2374
    %2515 = vmatprep.subr.bf16.mxu0 %v2377
    %2516 = vmatpush1.bf16.msra.mxu0 %v2376
    %2517 = vmatprep.subr.bf16.mxu0 %v2379
    %2518 = vmatpush1.bf16.msra.mxu0 %v2378
    %2519 = vmatprep.subr.bf16.mxu0 %v2381
    %2520 = vmatpush1.bf16.msra.mxu0 %v2380
    %2521 = vmatprep.subr.bf16.mxu0 %v2383
    %2522 = vmatpush1.bf16.msra.mxu0 %v2382
    %2523 = vmatprep.subr.bf16.mxu0 %v2385
    %2524 = vmatpush1.bf16.msra.mxu0 %v2384
    %2525 = vmatprep.subr.bf16.mxu0 %v2387
    %2526 = vmatpush1.bf16.msra.mxu0 %v2386
    %2527 = vmatprep.subr.bf16.mxu0 %v2389
    %2528 = vmatpush1.bf16.msra.mxu0 %v2388
    %2529 = vmatprep.subr.bf16.mxu0 %v2391
    %2530 = vmatpush1.bf16.msra.mxu0 %v2390
    %2531 = vmatprep.subr.bf16.mxu0 %v2393
    %2532 = vmatpush1.bf16.msra.mxu0 %v2392
    %2533 = vmatprep.subr.bf16.mxu0 %v2395
    %2534 = vmatpush1.bf16.msra.mxu0 %v2394
    %2535 = vmatprep.subr.bf16.mxu0 %v2397
    %2536 = vmatpush1.bf16.msra.mxu0 %v2396
    %2537 = vmatprep.subr.bf16.mxu0 %v2399
    %2538 = vmatpush1.bf16.msra.mxu0 %v2398
    %2539 = vmatprep.subr.bf16.mxu0 %v2401
    %2540 = vmatpush1.bf16.msra.mxu0 %v2400
    %2541 = vmatprep.mubr.bf16.mxu0 %v2070
    %2542 = vmatmul.mubr.bf16.gmra.mrb[0].mxu0 %v2069
    %v2543 = vpop.f32.mrb[0].mxu0
    %v2544 = vadd.f32 %v2501, %v2543
    %v2545 = vpop.f32.mrb[0].mxu0
    %v2546 = vadd.f32 %v2503, %v2545
    %v2547 = vpop.f32.mrb[0].mxu0
    %v2548 = vadd.f32 %v2505, %v2547
    %v2549 = vpop.f32.mrb[0].mxu0
    %v2550 = vadd.f32 %v2507, %v2549
    %2551 = vdwg.mxu0
    %2552 = vst [vmem:[#allocation8] sm:$0xff] %v2544
    %2553 = vst [vmem:[#allocation8 + $0x8] sm:$0xff] %v2546
    %2554 = vst [vmem:[#allocation8 + $0x10] sm:$0xff] %v2548
    %2555 = vst [vmem:[#allocation8 + $0x18] sm:$0xff] %v2550
    // Predicated region
    $region34: #{layernorm_net.1} parent=1 // pred_check
      _
    $region35: #{layernorm_net.1} parent=1 // pred_check_branch
      %2557 = sbr.rel (0) target = $region37
    $region36: #{layernorm_net.1} parent=1 // pred_region
      %s2559 = ssub.s32 512, 512
      %2560 = vsyncadd [#allocation4], %s2559
      %s2561 = sshll.u32 [#allocation8], 4
      %s2562 = int_to_ptr.vmem [resolvable:$true] %s2561
      %2567 = dma.vmem_to_hbm [thread:$0]  %s2562, 512, %s5, [#allocation4], 256, 256, 16
    $region37: #{layernorm_net.1} parent=1 // pred_fallthru
      _
    // Predicated region
    $region38: #{layernorm_net.1} parent=1 // pred_check
      _
    $region39: #{layernorm_net.1} parent=1 // pred_check_branch
      %2569 = sbr.rel (0) target = $region41
    $region40: #{layernorm_net.1} parent=1 // pred_region
      %2570 = dma.done [#allocation4], 512
    $region41: #{layernorm_net.1} parent=1 // pred_fallthru
      _
    %2571 = vsyncpa [#allocation3], 1
    %2572 = vsyncpa [#allocation6], 1
    %2573 = vsyncpa [#allocation4], 1

</llo_original>
